<compile_context>
chip_gen: v7x
topology: tpu7x:2x2x1
jax: 0.10.0
libtpu: 0.0.40
codegen_flags: <defaults>
</compile_context>

<pallas_src>
import math

import numpy as np

import jax
import jax.numpy as jnp
from jax.experimental import pallas as pl
from jax.experimental.pallas import tpu as pltpu

_LANE = 128


# ----------------------------------------------------------------------------
# Kernel: phase-decomposed (nearest-2x upsample folded into the weights) conv
# ----------------------------------------------------------------------------
def _phase_conv_kernel(src_ref, xc_ref, xt_ref, xb_ref, w_ref, b_ref, o_ref):
    # src_ref : (Nout,) int32     scalar prefetch (consumed by the index_maps)
    # xc_ref  : (1, TIN, W, Cin)  core rows of the source frame (original res)
    # xt_ref  : (1, 1,  W, Cin)   row above the tile (clamped at frame edge)
    # xb_ref  : (1, 1,  W, Cin)   row below the tile (clamped at frame edge)
    # w_ref   : (8, 2*Cin, Cout)  bf16 phase weights, index = (py*2+px)*2 + row_tap
    # b_ref   : (1, Cout) f32     bias
    # o_ref   : (1, 4, TIN, W, Cout) phase-separated output tile
    del src_ref
    TIN, W, Cin = xc_ref.shape[1], xc_ref.shape[2], xc_ref.shape[3]
    Cout = o_ref.shape[-1]
    cdt = jnp.bfloat16                       # MXU operand dtype (f32 accumulate)

    r = pl.program_id(1)
    R = pl.num_programs(1)

    # Halo rows, zeroed when they fall outside the frame (the conv's "same"
    # zero padding in upsampled space maps exactly onto a zero input row at
    # original resolution).  The mask multiply runs in the input dtype (f32)
    # -- v5e-friendly -- and only touches the two 1-row arrays.
    top = (xt_ref[0] * (r > 0).astype(xt_ref.dtype)).astype(cdt)        # (1,W,Cin)
    bot = (xb_ref[0] * (r < R - 1).astype(xb_ref.dtype)).astype(cdt)    # (1,W,Cin)
    rows = jnp.concatenate([top, xc_ref[0].astype(cdt), bot], axis=0)   # (TIN+2,W,Cin)

    # Column taps with the "same" zero column folded in (offsets -1, 0, +1).
    zc = jnp.zeros((TIN + 2, 1, Cin), cdt)
    rm = jnp.concatenate([zc, rows[:, :W - 1, :]], axis=1)   # value at col j-1
    rp = jnp.concatenate([rows[:, 1:, :], zc], axis=1)       # value at col j+1
    # K-collapsed operands (lane-aligned concat), one per column phase:
    #   px=0 -> taps (j-1, j),  px=1 -> taps (j, j+1)        (TIN+2, W, 2*Cin)
    o_col = (jnp.concatenate([rm, rows], axis=-1),
             jnp.concatenate([rows, rp], axis=-1))

    bias = b_ref[...].astype(jnp.float32)                    # (1, Cout)
    for py in range(2):
        for px in range(2):
            op = o_col[px]
            acc = bias
            for a in range(2):                               # the two row taps
                # static leading-dim slice -> (TIN*W, 2*Cin) matmul operand
                lhs = op[py + a: py + a + TIN].reshape(TIN * W, 2 * Cin)
                acc = acc + jnp.dot(lhs, w_ref[(py * 2 + px) * 2 + a],
                                    preferred_element_type=jnp.float32)
            # each output element is written exactly once, lane-dense in Cout
            o_ref[0, py * 2 + px] = acc.reshape(TIN, W, Cout).astype(o_ref.dtype)


# ----------------------------------------------------------------------------
# Wrapper helpers
# ----------------------------------------------------------------------------
def _ceil_to(v, m):
    return -(-v // m) * m


def _phase_weights(w_hwio):
    """Fold the nearest-2x upsample into the 3x3 weights -> 4 sub-pixel phases.

    Returns (8, 2*Cin, Cout) with index (py*2 + px)*2 + row_tap; the K axis is
    ordered [col_tap0 block ; col_tap1 block] to match the kernel's operands.
    Row taps address input rows {i-1, i} for py=0 and {i, i+1} for py=1;
    column taps address cols {j-1, j} for px=0 and {j, j+1} for px=1.
    """
    w = w_hwio.astype(jnp.float32)                       # (3, 3, Cin, Cout)
    Cin, Cout = w.shape[2], w.shape[3]
    # combine over ky per output-row phase: (py, a, kx, Cin, Cout)
    wr = jnp.stack([jnp.stack([w[0], w[1] + w[2]], axis=0),
                    jnp.stack([w[0] + w[1], w[2]], axis=0)], axis=0)
    # combine over kx per output-col phase: (py, px, a, b, Cin, Cout)
    col0 = jnp.stack([wr[:, :, 0], wr[:, :, 1] + wr[:, :, 2]], axis=2)
    col1 = jnp.stack([wr[:, :, 0] + wr[:, :, 1], wr[:, :, 2]], axis=2)
    wph = jnp.stack([col0, col1], axis=1)
    return wph.reshape(8, 2 * Cin, Cout)


def _vmem_capacity_bytes():
    try:
        info = pltpu.get_tpu_info()
        cap = int(getattr(info, "vmem_capacity_bytes", 0))
        if cap > 0:
            return cap
    except Exception:
        pass
    return 64 << 20          # conservative fallback: v7x per-TensorCore VMEM


def _estimate_tile_bytes(tin, W, Cin, Cout, elem_bytes):
    inp = 2 * (tin + 2) * W * Cin * elem_bytes       # double-buffered core + halos
    outp = 2 * 4 * tin * W * Cout * elem_bytes       # double-buffered phase output
    tmp = 7 * (tin + 2) * W * Cin * 2                # rows/rm/rp + 2 K-collapsed ops (bf16)
    acc = 4 * tin * W * Cout * 4                     # live f32 matmul results
    return inp + outp + tmp + acc


def _choose_input_row_tile(H, W, Cin, Cout, elem_bytes, w_bytes):
    """Largest divisor of H whose working set fits this generation's VMEM."""
    cap = _vmem_capacity_bytes()
    budget = (cap * 3) // 4 - w_bytes - (2 << 20)
    tin_best = 1
    for tin in range(1, H + 1):
        if H % tin:
            continue
        if _estimate_tile_bytes(tin, W, Cin, Cout, elem_bytes) <= budget:
            tin_best = tin
    return tin_best


# ----------------------------------------------------------------------------
# Fused nearest-2x upsample + Conv2d(3x3, stride 1, pad 1)
# ----------------------------------------------------------------------------
def fused_upsample2x_conv3x3(xs, src_idx, w_hwio, bias, *, row_tile=None):
    """xs: (Nsrc, H, W, Cin) source frames, src_idx: (Nout,) int32.

    Returns phase-separated output (Nout, 4, H, W, Cout) where
    out[n, 2*py+px, i, j] == conv3x3(upsample2x(frame src_idx[n]))[2i+py, 2j+px].
    `row_tile` is the number of ORIGINAL-resolution rows per grid step.
    """
    Nsrc, H, W, Cin = xs.shape
    Cout = w_hwio.shape[-1]
    Nout = int(src_idx.shape[0])
    in_bytes = xs.dtype.itemsize

    # Lane-alignment guard: pad channels to a multiple of 128 so loads/stores
    # stay unmasked and the K concatenation is lane-aligned (no-op for the
    # production 256/512-channel configs).
    Cin_p, Cout_p = _ceil_to(Cin, _LANE), _ceil_to(Cout, _LANE)
    w = w_hwio.astype(jnp.float32)
    if Cin_p != Cin or Cout_p != Cout:
        xs = jnp.pad(xs, ((0, 0), (0, 0), (0, 0), (0, Cin_p - Cin)))
        w = jnp.pad(w, ((0, 0), (0, 0), (0, Cin_p - Cin), (0, Cout_p - Cout)))
        bias = jnp.pad(bias, (0, Cout_p - Cout))

    wk = _phase_weights(w).astype(jnp.bfloat16)          # (8, 2*Cin_p, Cout_p)
    b2 = bias.reshape(1, Cout_p).astype(jnp.float32)

    w_bytes = 2 * int(wk.size) * 2                       # 2 buffers, bf16
    TIN = row_tile if row_tile is not None else _choose_input_row_tile(
        H, W, Cin_p, Cout_p, in_bytes, w_bytes)
    assert H % TIN == 0, (H, TIN)
    R = H // TIN

    est = w_bytes + _estimate_tile_bytes(TIN, W, Cin_p, Cout_p, in_bytes) + (2 << 20)
    cap = _vmem_capacity_bytes()
    vmem_limit = int(min(cap, max(2 * est, 32 << 20)))

    cost = pl.CostEstimate(
        flops=2 * Nout * 4 * H * W * (4 * Cin_p) * Cout_p,
        transcendentals=0,
        bytes_accessed=int(Nout * (H + 2 * R) * W * Cin_p * in_bytes
                           + Nout * 4 * H * W * Cout_p * in_bytes
                           + int(wk.size) * 2))

    grid_spec = pltpu.PrefetchScalarGridSpec(
        num_scalar_prefetch=1,
        grid=(Nout, R),
        in_specs=[
            # Temporal nearest duplication lives entirely in these index_maps.
            # The same source array is passed three times: core rows plus the
            # two clamped halo rows (row-windowed DMA; residency ~ TIN rows).
            pl.BlockSpec((1, TIN, W, Cin_p),
                         lambda n, r, src: (src[n], r, 0, 0)),
            pl.BlockSpec((1, 1, W, Cin_p),
                         lambda n, r, src: (src[n], jnp.maximum(r * TIN - 1, 0), 0, 0)),
            pl.BlockSpec((1, 1, W, Cin_p),
                         lambda n, r, src: (src[n], jnp.minimum((r + 1) * TIN, H - 1), 0, 0)),
            pl.BlockSpec((8, 2 * Cin_p, Cout_p), lambda n, r, src: (0, 0, 0)),
            pl.BlockSpec((1, Cout_p), lambda n, r, src: (0, 0)),
        ],
        out_specs=pl.BlockSpec((1, 4, TIN, W, Cout_p),
                               lambda n, r, src: (n, 0, r, 0, 0)),
    )
    y = pl.pallas_call(
        _phase_conv_kernel,
        out_shape=jax.ShapeDtypeStruct((Nout, 4, H, W, Cout_p), xs.dtype),
        grid_spec=grid_spec,
        compiler_params=pltpu.CompilerParams(
            dimension_semantics=("parallel", "arbitrary"),
            vmem_limit_bytes=vmem_limit),
        cost_estimate=cost,
    )(src_idx, xs, xs, xs, wk, b2)
    if Cout_p != Cout:
        y = y[..., :Cout]
    return y


# ----------------------------------------------------------------------------
# Upsample3D.forward
# ----------------------------------------------------------------------------
def _src_time_indices(T, compress_time):
    if compress_time and T > 1:
        if T % 2 == 1:
            t_src = np.concatenate([[0], 1 + np.arange(2 * (T - 1)) // 2])
        else:
            t_src = np.arange(2 * T) // 2
    else:
        t_src = np.arange(T)
    return t_src.astype(np.int32)


def upsample3d_forward(x, conv_params=None, *, with_conv=True,
                       compress_time=False, row_tile=None):
    """x: (B, C, T, H, W) (PyTorch NCTHW). Returns (B, C, T', 2H, 2W)."""
    B, C, T, H, W = x.shape

    # Static per-output-frame source index (fuses the temporal nearest repeat).
    t_src = _src_time_indices(T, compress_time)
    T_out = int(t_src.shape[0])
    src_idx = (np.arange(B)[:, None] * T + t_src[None, :]).reshape(-1)
    src_idx = jnp.asarray(src_idx.astype(np.int32))

    # NCTHW -> (B*T, H, W, C): channels-last frames (lane dim = C). Layout glue.
    xs = jnp.transpose(x, (0, 2, 3, 4, 1)).reshape(B * T, H, W, C)

    if with_conv:
        w_hwio, bias = conv_params
        y = fused_upsample2x_conv3x3(xs, src_idx, w_hwio, bias, row_tile=row_tile)
        Cout = y.shape[-1]
        # The 2x2 phase interleave rides along the layout transpose back to
        # NCTHW (one XLA relayout pass, same as the plain channels transpose).
        y = y.reshape(B, T_out, 2, 2, H, W, Cout)
        y = jnp.transpose(y, (0, 6, 1, 4, 2, 5, 3))      # (B, C, T', H, 2, W, 2)
        return y.reshape(B, Cout, T_out, 2 * H, 2 * W)

    # Upsample only: pure data duplication, no arithmetic -> plain JAX glue.
    xg = xs[src_idx]                                      # temporal nearest
    xg = jnp.broadcast_to(xg[:, :, None, :, None, :], (B * T_out, H, 2, W, 2, C))
    y = xg.reshape(B, T_out, 2 * H, 2 * W, C)
    return jnp.transpose(y, (0, 4, 1, 2, 3))              # (B, C, T', 2H, 2W)


# ----------------------------------------------------------------------------
# Pure-JAX reference (for correctness check)
# ----------------------------------------------------------------------------
def _ref_forward(x, w_oihw, bias, *, with_conv, compress_time):
    B, C, T, H, W = x.shape

    def up2_spatial(y):  # NCHW / NCTHW: last two axes
        return jnp.repeat(jnp.repeat(y, 2, axis=-2), 2, axis=-1)

    if compress_time and T > 1:
        if T % 2 == 1:
            xf = up2_spatial(x[:, :, 0])
            xr = up2_spatial(jnp.repeat(x[:, :, 1:], 2, axis=2))
            x = jnp.concatenate([xf[:, :, None], xr], axis=2)
        else:
            x = up2_spatial(jnp.repeat(x, 2, axis=2))
    else:
        x = up2_spatial(x)

    if with_conv:
        To = x.shape[2]
        xf = jnp.transpose(x, (0, 2, 1, 3, 4)).reshape(
            B * To, C, x.shape[3], x.shape[4])
        y = jax.lax.conv_general_dilated(
            xf, w_oihw, window_strides=(1, 1), padding=((1, 1), (1, 1)),
            dimension_numbers=("NCHW", "OIHW", "NCHW"))
        y = y + bias.reshape(1, -1, 1, 1)
        x = jnp.transpose(
            y.reshape(B, To, -1, y.shape[2], y.shape[3]), (0, 2, 1, 3, 4))
    return x


# ----------------------------------------------------------------------------
if __name__ == "__main__":
    key = jax.random.PRNGKey(0)
    k_x, k_w, k_b = jax.random.split(key, 3)

    B, C, T, H, W = 2, 16, 5, 8, 8          # small, exercises odd-T branch
    x = jax.random.normal(k_x, (B, C, T, H, W), dtype=jnp.float32)

    # Deterministic Conv2d(C, C, 3, padding=1) parameters (PyTorch-style init)
    fan_in = C * 3 * 3
    bound = 1.0 / math.sqrt(fan_in)
    w_oihw = jax.random.uniform(k_w, (C, C, 3, 3), dtype=jnp.float32,
                                minval=-bound, maxval=bound)
    bias = jax.random.uniform(k_b, (C,), dtype=jnp.float32,
                              minval=-bound, maxval=bound)
    w_hwio = jnp.transpose(w_oihw, (2, 3, 1, 0))   # (kh, kw, Cin, Cout)

    # bf16 MXU operands (f32 accumulation) -> loosened tolerance vs f32 ref.
    tol = dict(atol=5e-2, rtol=5e-2)

    # --- compress_time=True, odd T; forced row tiling (exercises halo rows) ---
    out = jax.block_until_ready(upsample3d_forward(
        x, (w_hwio, bias), with_conv=True, compress_time=True, row_tile=4))
    assert out.shape == (B, C, 1 + 2 * (T - 1), 2 * H, 2 * W), out.shape
    ref = _ref_forward(x, w_oihw, bias, with_conv=True, compress_time=True)
    assert jnp.allclose(out, ref, **tol), float(jnp.max(jnp.abs(out - ref)))

    # --- compress_time=False (spatial-only branch), auto tile selection ---
    out = jax.block_until_ready(upsample3d_forward(
        x, (w_hwio, bias), with_conv=True, compress_time=False))
    assert out.shape == (B, C, T, 2 * H, 2 * W), out.shape
    ref = _ref_forward(x, w_oihw, bias, with_conv=True, compress_time=False)
    assert jnp.allclose(out, ref, **tol), float(jnp.max(jnp.abs(out - ref)))

    # --- compress_time=True, even T branch ---
    xe = x[:, :, :4]
    out = jax.block_until_ready(upsample3d_forward(
        xe, (w_hwio, bias), with_conv=True, compress_time=True))
    assert out.shape == (B, C, 8, 2 * H, 2 * W), out.shape
    ref = _ref_forward(xe, w_oihw, bias, with_conv=True, compress_time=True)
    assert jnp.allclose(out, ref, **tol), float(jnp.max(jnp.abs(out - ref)))

    # --- with_conv=False path (pure duplication, exact) ---
    out = jax.block_until_ready(upsample3d_forward(
        x, None, with_conv=False, compress_time=True))
    ref = _ref_forward(x, w_oihw, bias, with_conv=False, compress_time=True)
    assert jnp.allclose(out, ref), "upsample-only path mismatch"

    print("KERNEL_OK")
</pallas_src>

<mosaic_0001>
module attributes {stable_mosaic.version = 11 : i64} {
  func.func @_phase_conv_kernel(%arg0: i32, %arg1: i32, %arg2: memref<18xi32, #tpu.memory_space<smem>>, %arg3: memref<1x4x8x128xf32, #tpu.memory_space<vmem>>, %arg4: memref<1x1x8x128xf32, #tpu.memory_space<vmem>>, %arg5: memref<1x1x8x128xf32, #tpu.memory_space<vmem>>, %arg6: memref<8x256x128xbf16, #tpu.memory_space<vmem>>, %arg7: memref<1x128xf32, #tpu.memory_space<vmem>>, %arg8: memref<1x4x4x8x128xf32, #tpu.memory_space<vmem>>) attributes {dimension_semantics = [#tpu.dimension_semantics<parallel>, #tpu.dimension_semantics<arbitrary>], iteration_bounds = array<i64: 18, 2>, scalar_prefetch = 1 : i64, scratch_operands = 0 : i64, tpu.core_type = #tpu.core_type<tc>, window_params = [{transform_indices = @transform_0, window_bounds = array<i64: 1, 4, 8, 128>}, {transform_indices = @transform_1, window_bounds = array<i64: 1, 1, 8, 128>}, {transform_indices = @transform_2, window_bounds = array<i64: 1, 1, 8, 128>}, {pipeline_mode = #tpu.pipeline_mode<synchronous>, transform_indices = @transform_3, window_bounds = array<i64: 8, 256, 128>}, {pipeline_mode = #tpu.pipeline_mode<synchronous>, transform_indices = @transform_4, window_bounds = array<i64: 1, 128>}, {transform_indices = @transform_5, window_bounds = array<i64: 1, 4, 4, 8, 128>}]} {
    %c0 = arith.constant 0 : index
    %c0_0 = arith.constant 0 : index
    %c0_1 = arith.constant 0 : index
    %c0_2 = arith.constant 0 : index
    %0 = vector.load %arg4[%c0, %c0_0, %c0_1, %c0_2] : memref<1x1x8x128xf32, #tpu.memory_space<vmem>>, vector<1x1x8x128xf32>
    %1 = vector.shape_cast %0 : vector<1x1x8x128xf32> to vector<1x8x128xf32>
    %c0_i32 = arith.constant 0 : i32
    %2 = arith.cmpi sgt, %arg1, %c0_i32 : i32
    %3 = arith.extui %2 : i1 to i32
    %4 = arith.sitofp %3 : i32 to f32
    %5 = vector.broadcast %4 : f32 to vector<1x8x128xf32>
    %6 = arith.mulf %1, %5 : vector<1x8x128xf32>
    %7 = arith.truncf %6 : vector<1x8x128xf32> to vector<1x8x128xbf16>
    %c0_3 = arith.constant 0 : index
    %c0_4 = arith.constant 0 : index
    %c0_5 = arith.constant 0 : index
    %c0_6 = arith.constant 0 : index
    %8 = vector.load %arg5[%c0_3, %c0_4, %c0_5, %c0_6] : memref<1x1x8x128xf32, #tpu.memory_space<vmem>>, vector<1x1x8x128xf32>
    %9 = vector.shape_cast %8 : vector<1x1x8x128xf32> to vector<1x8x128xf32>
    %c1_i32 = arith.constant 1 : i32
    %10 = arith.cmpi slt, %arg1, %c1_i32 : i32
    %11 = arith.extui %10 : i1 to i32
    %12 = arith.sitofp %11 : i32 to f32
    %13 = vector.broadcast %12 : f32 to vector<1x8x128xf32>
    %14 = arith.mulf %9, %13 : vector<1x8x128xf32>
    %15 = arith.truncf %14 : vector<1x8x128xf32> to vector<1x8x128xbf16>
    %c0_7 = arith.constant 0 : index
    %c0_8 = arith.constant 0 : index
    %c0_9 = arith.constant 0 : index
    %c0_10 = arith.constant 0 : index
    %16 = vector.load %arg3[%c0_7, %c0_8, %c0_9, %c0_10] : memref<1x4x8x128xf32, #tpu.memory_space<vmem>>, vector<1x4x8x128xf32>
    %17 = vector.shape_cast %16 : vector<1x4x8x128xf32> to vector<4x8x128xf32>
    %18 = arith.truncf %17 : vector<4x8x128xf32> to vector<4x8x128xbf16>
    %19 = tpu.concatenate %7, %18, %15 in 0 : vector<1x8x128xbf16>, vector<4x8x128xbf16>, vector<1x8x128xbf16> -> vector<6x8x128xbf16>
    %cst = arith.constant 0.000000e+00 : bf16
    %20 = vector.broadcast %cst : bf16 to vector<6x1x128xbf16>
    %21 = vector.extract_strided_slice %19 {offsets = [0, 0, 0], sizes = [6, 7, 128], strides = [1, 1, 1]} : vector<6x8x128xbf16> to vector<6x7x128xbf16>
    %22 = tpu.concatenate %20, %21 in 1 : vector<6x1x128xbf16>, vector<6x7x128xbf16> -> vector<6x8x128xbf16>
    %23 = vector.extract_strided_slice %19 {offsets = [0, 1, 0], sizes = [6, 7, 128], strides = [1, 1, 1]} : vector<6x8x128xbf16> to vector<6x7x128xbf16>
    %24 = tpu.concatenate %23, %20 in 1 : vector<6x7x128xbf16>, vector<6x1x128xbf16> -> vector<6x8x128xbf16>
    %25 = tpu.concatenate %22, %19 in 2 : vector<6x8x128xbf16>, vector<6x8x128xbf16> -> vector<6x8x256xbf16>
    %26 = tpu.concatenate %19, %24 in 2 : vector<6x8x128xbf16>, vector<6x8x128xbf16> -> vector<6x8x256xbf16>
    %c0_11 = arith.constant 0 : index
    %c0_12 = arith.constant 0 : index
    %27 = vector.load %arg7[%c0_11, %c0_12] : memref<1x128xf32, #tpu.memory_space<vmem>>, vector<1x128xf32>
    %28 = vector.extract_strided_slice %25 {offsets = [0, 0, 0], sizes = [4, 8, 256], strides = [1, 1, 1]} : vector<6x8x256xbf16> to vector<4x8x256xbf16>
    %29 = vector.shape_cast %28 : vector<4x8x256xbf16> to vector<32x256xbf16>
    %c0_13 = arith.constant 0 : index
    %c0_14 = arith.constant 0 : index
    %c0_15 = arith.constant 0 : index
    %30 = vector.load %arg6[%c0_13, %c0_14, %c0_15] : memref<8x256x128xbf16, #tpu.memory_space<vmem>>, vector<1x256x128xbf16>
    %31 = vector.shape_cast %30 : vector<1x256x128xbf16> to vector<256x128xbf16>
    %cst_16 = arith.constant dense<0.000000e+00> : vector<32x128xf32>
    %32 = tpu.matmul %29, %31, %cst_16 {dimension_numbers = #tpu.dot_dimension_numbers<[1], [0], [0], [1], [0, 0, 1, 1], [], []>} : vector<32x256xbf16>, vector<256x128xbf16>, vector<32x128xf32> -> vector<32x128xf32>
    %33 = vector.broadcast %27 : vector<1x128xf32> to vector<32x128xf32>
    %34 = arith.addf %33, %32 : vector<32x128xf32>
    %35 = vector.extract_strided_slice %25 {offsets = [1, 0, 0], sizes = [4, 8, 256], strides = [1, 1, 1]} : vector<6x8x256xbf16> to vector<4x8x256xbf16>
    %36 = vector.shape_cast %35 : vector<4x8x256xbf16> to vector<32x256xbf16>
    %c1 = arith.constant 1 : index
    %c0_17 = arith.constant 0 : index
    %c0_18 = arith.constant 0 : index
    %37 = vector.load %arg6[%c1, %c0_17, %c0_18] : memref<8x256x128xbf16, #tpu.memory_space<vmem>>, vector<1x256x128xbf16>
    %38 = vector.shape_cast %37 : vector<1x256x128xbf16> to vector<256x128xbf16>
    %cst_19 = arith.constant dense<0.000000e+00> : vector<32x128xf32>
    %39 = tpu.matmul %36, %38, %cst_19 {dimension_numbers = #tpu.dot_dimension_numbers<[1], [0], [0], [1], [0, 0, 1, 1], [], []>} : vector<32x256xbf16>, vector<256x128xbf16>, vector<32x128xf32> -> vector<32x128xf32>
    %40 = arith.addf %34, %39 : vector<32x128xf32>
    %41 = vector.shape_cast %40 : vector<32x128xf32> to vector<4x8x128xf32>
    %c0_20 = arith.constant 0 : index
    %c0_21 = arith.constant 0 : index
    %c0_22 = arith.constant 0 : index
    %c0_23 = arith.constant 0 : index
    %c0_24 = arith.constant 0 : index
    %42 = vector.load %arg8[%c0_20, %c0_21, %c0_22, %c0_23, %c0_24] : memref<1x4x4x8x128xf32, #tpu.memory_space<vmem>>, vector<1x1x4x8x128xf32>
    %43 = vector.shape_cast %42 : vector<1x1x4x8x128xf32> to vector<4x8x128xf32>
    %44 = vector.shape_cast %41 : vector<4x8x128xf32> to vector<1x1x4x8x128xf32>
    tpu.vector_store %arg8[%c0_20, %c0_21, %c0_22, %c0_23, %c0_24], %44 {strides = array<i32>} : memref<1x4x4x8x128xf32, #tpu.memory_space<vmem>>, vector<1x1x4x8x128xf32>,
    %45 = vector.extract_strided_slice %26 {offsets = [0, 0, 0], sizes = [4, 8, 256], strides = [1, 1, 1]} : vector<6x8x256xbf16> to vector<4x8x256xbf16>
    %46 = vector.shape_cast %45 : vector<4x8x256xbf16> to vector<32x256xbf16>
    %c2 = arith.constant 2 : index
    %c0_25 = arith.constant 0 : index
    %c0_26 = arith.constant 0 : index
    %47 = vector.load %arg6[%c2, %c0_25, %c0_26] : memref<8x256x128xbf16, #tpu.memory_space<vmem>>, vector<1x256x128xbf16>
    %48 = vector.shape_cast %47 : vector<1x256x128xbf16> to vector<256x128xbf16>
    %cst_27 = arith.constant dense<0.000000e+00> : vector<32x128xf32>
    %49 = tpu.matmul %46, %48, %cst_27 {dimension_numbers = #tpu.dot_dimension_numbers<[1], [0], [0], [1], [0, 0, 1, 1], [], []>} : vector<32x256xbf16>, vector<256x128xbf16>, vector<32x128xf32> -> vector<32x128xf32>
    %50 = vector.broadcast %27 : vector<1x128xf32> to vector<32x128xf32>
    %51 = arith.addf %50, %49 : vector<32x128xf32>
    %52 = vector.extract_strided_slice %26 {offsets = [1, 0, 0], sizes = [4, 8, 256], strides = [1, 1, 1]} : vector<6x8x256xbf16> to vector<4x8x256xbf16>
    %53 = vector.shape_cast %52 : vector<4x8x256xbf16> to vector<32x256xbf16>
    %c3 = arith.constant 3 : index
    %c0_28 = arith.constant 0 : index
    %c0_29 = arith.constant 0 : index
    %54 = vector.load %arg6[%c3, %c0_28, %c0_29] : memref<8x256x128xbf16, #tpu.memory_space<vmem>>, vector<1x256x128xbf16>
    %55 = vector.shape_cast %54 : vector<1x256x128xbf16> to vector<256x128xbf16>
    %cst_30 = arith.constant dense<0.000000e+00> : vector<32x128xf32>
    %56 = tpu.matmul %53, %55, %cst_30 {dimension_numbers = #tpu.dot_dimension_numbers<[1], [0], [0], [1], [0, 0, 1, 1], [], []>} : vector<32x256xbf16>, vector<256x128xbf16>, vector<32x128xf32> -> vector<32x128xf32>
    %57 = arith.addf %51, %56 : vector<32x128xf32>
    %58 = vector.shape_cast %57 : vector<32x128xf32> to vector<4x8x128xf32>
    %c0_31 = arith.constant 0 : index
    %c1_32 = arith.constant 1 : index
    %c0_33 = arith.constant 0 : index
    %c0_34 = arith.constant 0 : index
    %c0_35 = arith.constant 0 : index
    %59 = vector.load %arg8[%c0_31, %c1_32, %c0_33, %c0_34, %c0_35] : memref<1x4x4x8x128xf32, #tpu.memory_space<vmem>>, vector<1x1x4x8x128xf32>
    %60 = vector.shape_cast %59 : vector<1x1x4x8x128xf32> to vector<4x8x128xf32>
    %61 = vector.shape_cast %58 : vector<4x8x128xf32> to vector<1x1x4x8x128xf32>
    tpu.vector_store %arg8[%c0_31, %c1_32, %c0_33, %c0_34, %c0_35], %61 {strides = array<i32>} : memref<1x4x4x8x128xf32, #tpu.memory_space<vmem>>, vector<1x1x4x8x128xf32>,
    %62 = vector.extract_strided_slice %25 {offsets = [1, 0, 0], sizes = [4, 8, 256], strides = [1, 1, 1]} : vector<6x8x256xbf16> to vector<4x8x256xbf16>
    %63 = vector.shape_cast %62 : vector<4x8x256xbf16> to vector<32x256xbf16>
    %c4 = arith.constant 4 : index
    %c0_36 = arith.constant 0 : index
    %c0_37 = arith.constant 0 : index
    %64 = vector.load %arg6[%c4, %c0_36, %c0_37] : memref<8x256x128xbf16, #tpu.memory_space<vmem>>, vector<1x256x128xbf16>
    %65 = vector.shape_cast %64 : vector<1x256x128xbf16> to vector<256x128xbf16>
    %cst_38 = arith.constant dense<0.000000e+00> : vector<32x128xf32>
    %66 = tpu.matmul %63, %65, %cst_38 {dimension_numbers = #tpu.dot_dimension_numbers<[1], [0], [0], [1], [0, 0, 1, 1], [], []>} : vector<32x256xbf16>, vector<256x128xbf16>, vector<32x128xf32> -> vector<32x128xf32>
    %67 = vector.broadcast %27 : vector<1x128xf32> to vector<32x128xf32>
    %68 = arith.addf %67, %66 : vector<32x128xf32>
    %69 = vector.extract_strided_slice %25 {offsets = [2, 0, 0], sizes = [4, 8, 256], strides = [1, 1, 1]} : vector<6x8x256xbf16> to vector<4x8x256xbf16>
    %70 = vector.shape_cast %69 : vector<4x8x256xbf16> to vector<32x256xbf16>
    %c5 = arith.constant 5 : index
    %c0_39 = arith.constant 0 : index
    %c0_40 = arith.constant 0 : index
    %71 = vector.load %arg6[%c5, %c0_39, %c0_40] : memref<8x256x128xbf16, #tpu.memory_space<vmem>>, vector<1x256x128xbf16>
    %72 = vector.shape_cast %71 : vector<1x256x128xbf16> to vector<256x128xbf16>
    %cst_41 = arith.constant dense<0.000000e+00> : vector<32x128xf32>
    %73 = tpu.matmul %70, %72, %cst_41 {dimension_numbers = #tpu.dot_dimension_numbers<[1], [0], [0], [1], [0, 0, 1, 1], [], []>} : vector<32x256xbf16>, vector<256x128xbf16>, vector<32x128xf32> -> vector<32x128xf32>
    %74 = arith.addf %68, %73 : vector<32x128xf32>
    %75 = vector.shape_cast %74 : vector<32x128xf32> to vector<4x8x128xf32>
    %c0_42 = arith.constant 0 : index
    %c2_43 = arith.constant 2 : index
    %c0_44 = arith.constant 0 : index
    %c0_45 = arith.constant 0 : index
    %c0_46 = arith.constant 0 : index
    %76 = vector.load %arg8[%c0_42, %c2_43, %c0_44, %c0_45, %c0_46] : memref<1x4x4x8x128xf32, #tpu.memory_space<vmem>>, vector<1x1x4x8x128xf32>
    %77 = vector.shape_cast %76 : vector<1x1x4x8x128xf32> to vector<4x8x128xf32>
    %78 = vector.shape_cast %75 : vector<4x8x128xf32> to vector<1x1x4x8x128xf32>
    tpu.vector_store %arg8[%c0_42, %c2_43, %c0_44, %c0_45, %c0_46], %78 {strides = array<i32>} : memref<1x4x4x8x128xf32, #tpu.memory_space<vmem>>, vector<1x1x4x8x128xf32>,
    %79 = vector.extract_strided_slice %26 {offsets = [1, 0, 0], sizes = [4, 8, 256], strides = [1, 1, 1]} : vector<6x8x256xbf16> to vector<4x8x256xbf16>
    %80 = vector.shape_cast %79 : vector<4x8x256xbf16> to vector<32x256xbf16>
    %c6 = arith.constant 6 : index
    %c0_47 = arith.constant 0 : index
    %c0_48 = arith.constant 0 : index
    %81 = vector.load %arg6[%c6, %c0_47, %c0_48] : memref<8x256x128xbf16, #tpu.memory_space<vmem>>, vector<1x256x128xbf16>
    %82 = vector.shape_cast %81 : vector<1x256x128xbf16> to vector<256x128xbf16>
    %cst_49 = arith.constant dense<0.000000e+00> : vector<32x128xf32>
    %83 = tpu.matmul %80, %82, %cst_49 {dimension_numbers = #tpu.dot_dimension_numbers<[1], [0], [0], [1], [0, 0, 1, 1], [], []>} : vector<32x256xbf16>, vector<256x128xbf16>, vector<32x128xf32> -> vector<32x128xf32>
    %84 = vector.broadcast %27 : vector<1x128xf32> to vector<32x128xf32>
    %85 = arith.addf %84, %83 : vector<32x128xf32>
    %86 = vector.extract_strided_slice %26 {offsets = [2, 0, 0], sizes = [4, 8, 256], strides = [1, 1, 1]} : vector<6x8x256xbf16> to vector<4x8x256xbf16>
    %87 = vector.shape_cast %86 : vector<4x8x256xbf16> to vector<32x256xbf16>
    %c7 = arith.constant 7 : index
    %c0_50 = arith.constant 0 : index
    %c0_51 = arith.constant 0 : index
    %88 = vector.load %arg6[%c7, %c0_50, %c0_51] : memref<8x256x128xbf16, #tpu.memory_space<vmem>>, vector<1x256x128xbf16>
    %89 = vector.shape_cast %88 : vector<1x256x128xbf16> to vector<256x128xbf16>
    %cst_52 = arith.constant dense<0.000000e+00> : vector<32x128xf32>
    %90 = tpu.matmul %87, %89, %cst_52 {dimension_numbers = #tpu.dot_dimension_numbers<[1], [0], [0], [1], [0, 0, 1, 1], [], []>} : vector<32x256xbf16>, vector<256x128xbf16>, vector<32x128xf32> -> vector<32x128xf32>
    %91 = arith.addf %85, %90 : vector<32x128xf32>
    %92 = vector.shape_cast %91 : vector<32x128xf32> to vector<4x8x128xf32>
    %c0_53 = arith.constant 0 : index
    %c3_54 = arith.constant 3 : index
    %c0_55 = arith.constant 0 : index
    %c0_56 = arith.constant 0 : index
    %c0_57 = arith.constant 0 : index
    %93 = vector.load %arg8[%c0_53, %c3_54, %c0_55, %c0_56, %c0_57] : memref<1x4x4x8x128xf32, #tpu.memory_space<vmem>>, vector<1x1x4x8x128xf32>
    %94 = vector.shape_cast %93 : vector<1x1x4x8x128xf32> to vector<4x8x128xf32>
    %95 = vector.shape_cast %92 : vector<4x8x128xf32> to vector<1x1x4x8x128xf32>
    tpu.vector_store %arg8[%c0_53, %c3_54, %c0_55, %c0_56, %c0_57], %95 {strides = array<i32>} : memref<1x4x4x8x128xf32, #tpu.memory_space<vmem>>, vector<1x1x4x8x128xf32>,
    return
  }
  func.func @transform_0(%arg0: i32, %arg1: i32, %arg2: memref<18xi32, #tpu.memory_space<smem>>) -> (i32, i32, i32, i32) {
    %0 = arith.index_cast %arg0 : i32 to index
    %1 = memref.load %arg2[%0] : memref<18xi32, #tpu.memory_space<smem>>
    %c0_i32 = arith.constant 0 : i32
    %c0_i32_0 = arith.constant 0 : i32
    %c0_i32_1 = arith.constant 0 : i32
    return %1, %arg1, %c0_i32, %c0_i32_0 : i32, i32, i32, i32
  }
  func.func @transform_1(%arg0: i32, %arg1: i32, %arg2: memref<18xi32, #tpu.memory_space<smem>>) -> (i32, i32, i32, i32) {
    %0 = arith.index_cast %arg0 : i32 to index
    %1 = memref.load %arg2[%0] : memref<18xi32, #tpu.memory_space<smem>>
    %c4_i32 = arith.constant 4 : i32
    %2 = arith.muli %arg1, %c4_i32 : i32
    %c1_i32 = arith.constant 1 : i32
    %3 = arith.subi %2, %c1_i32 : i32
    %c0_i32 = arith.constant 0 : i32
    %4 = arith.maxsi %3, %c0_i32 : i32
    %c0_i32_0 = arith.constant 0 : i32
    %c0_i32_1 = arith.constant 0 : i32
    %c0_i32_2 = arith.constant 0 : i32
    return %1, %4, %c0_i32_0, %c0_i32_1 : i32, i32, i32, i32
  }
  func.func @transform_2(%arg0: i32, %arg1: i32, %arg2: memref<18xi32, #tpu.memory_space<smem>>) -> (i32, i32, i32, i32) {
    %0 = arith.index_cast %arg0 : i32 to index
    %1 = memref.load %arg2[%0] : memref<18xi32, #tpu.memory_space<smem>>
    %c1_i32 = arith.constant 1 : i32
    %2 = arith.addi %arg1, %c1_i32 : i32
    %c4_i32 = arith.constant 4 : i32
    %3 = arith.muli %2, %c4_i32 : i32
    %c7_i32 = arith.constant 7 : i32
    %4 = arith.minsi %3, %c7_i32 : i32
    %c0_i32 = arith.constant 0 : i32
    %c0_i32_0 = arith.constant 0 : i32
    %c0_i32_1 = arith.constant 0 : i32
    return %1, %4, %c0_i32, %c0_i32_0 : i32, i32, i32, i32
  }
  func.func @transform_3(%arg0: i32, %arg1: i32, %arg2: memref<18xi32, #tpu.memory_space<smem>>) -> (i32, i32, i32) {
    %c0_i32 = arith.constant 0 : i32
    %c0_i32_0 = arith.constant 0 : i32
    %c0_i32_1 = arith.constant 0 : i32
    %c0_i32_2 = arith.constant 0 : i32
    return %c0_i32, %c0_i32_0, %c0_i32_1 : i32, i32, i32
  }
  func.func @transform_4(%arg0: i32, %arg1: i32, %arg2: memref<18xi32, #tpu.memory_space<smem>>) -> (i32, i32) {
    %c0_i32 = arith.constant 0 : i32
    %c0_i32_0 = arith.constant 0 : i32
    %c0_i32_1 = arith.constant 0 : i32
    return %c0_i32, %c0_i32_0 : i32, i32
  }
  func.func @transform_5(%arg0: i32, %arg1: i32, %arg2: memref<18xi32, #tpu.memory_space<smem>>) -> (i32, i32, i32, i32, i32) {
    %c0_i32 = arith.constant 0 : i32
    %c0_i32_0 = arith.constant 0 : i32
    %c0_i32_1 = arith.constant 0 : i32
    %c0_i32_2 = arith.constant 0 : i32
    return %arg0, %c0_i32, %arg1, %c0_i32_0, %c0_i32_1 : i32, i32, i32, i32, i32
  }
}

</mosaic_0001>

<llo_original>
// kernel: tpu_custom_call.1
$region0: #{tpu_custom_call.1}
  #allocation0 [shape = 'u32[]', space=smem, size = 0x4, offset = 0x4, fixed_abs, tag = 'smem constant byte address 0x4 - core index']
  #allocation1 [shape = 'u32[144,128]{1,0:T(1,128)}', space=vmem, size = 0x12000, scoped, tag = 'internal scratch']
  #allocation2 [shape = 's32[1]{0}', space=sflag, size = 0x4, scoped, tag = 'scoped memory for tpu_custom_call.1']
  #allocation3 [shape = 'u8[512]{0}', space=smem, size = 0x200, scoped, tag = 'prefetched SMEM operand 0']
  #allocation14 [shape = 's32[]', space=sflag, size = 0x4, offset = 0, fixed_abs, tag = 'sflag constant byte address 0x0 - dummy sync flag']
  %s0 = inlined_call_operand.hbm [shape: s32[18], index: 0, kind: input, shape index: {}]
  %s1 = inlined_call_operand.hbm [shape: f32[10,8,8,128], index: 1, kind: input, shape index: {}]
  %s2 = inlined_call_operand.hbm [shape: f32[10,8,8,128], index: 2, kind: input, shape index: {}]
  %s3 = inlined_call_operand.hbm [shape: f32[10,8,8,128], index: 3, kind: input, shape index: {}]
  %s4 = inlined_call_operand.hbm [shape: bf16[8,256,128], index: 4, kind: input, shape index: {}]
  %s5 = inlined_call_operand.hbm [shape: f32[1,128], index: 5, kind: input, shape index: {}]
  %s6 = inlined_call_operand.hbm [shape: f32[18,4,8,8,128], index: 6, kind: output, shape index: {}]
  %s7 = sld [smem:[#allocation0]]
  $region73: #{tpu_custom_call.1} parent=0
    _
  %s9 = ssub.s32 1, %s7
  %s10 = scalar_select 0, %s9, %s7
  %12 = dma.hbm_to_smem %s0, 16, [#allocation3], [#allocation2]
  %13 = dma.done [#allocation2], 16
  %14 = sfence
  $region1: #{tpu_custom_call.1} parent=0
    #allocation4 [shape = 'u8[32768]{0}', space=vmem, size = 0x8000, scoped, tag = 'input window, operand 1']
    #allocation5 [shape = 's32[2]{0}', space=sflag, size = 0x8, scoped, tag = 'scoped memory for tpu_custom_call.1']
    #allocation6 [shape = 's32[2]{0}', space=sflag, size = 0x8, scoped, tag = 'scoped memory for tpu_custom_call.1']
    #allocation7 [shape = 'u8[8192]{0}', space=vmem, size = 0x2000, scoped, tag = 'input window, operand 2']
    #allocation8 [shape = 's32[2]{0}', space=sflag, size = 0x8, scoped, tag = 'scoped memory for tpu_custom_call.1']
    #allocation9 [shape = 'u8[8192]{0}', space=vmem, size = 0x2000, scoped, tag = 'input window, operand 3']
    #allocation10 [shape = 'u8[524288]{0}', space=vmem, size = 0x80000, scoped, tag = 'input window, operand 4, single buffered']
    #allocation11 [shape = 's32[1]{0}', space=sflag, size = 0x4, scoped, tag = 'scoped memory for tpu_custom_call.1']
    #allocation12 [shape = 'u8[512]{0}', space=vmem, size = 0x400, scoped, tag = 'input window, operand 5, single buffered']
    #allocation13 [shape = 'u8[131072]{0}', space=vmem, size = 0x20000, scoped, tag = 'output window, operand 0']
    %15 = vsyncpa [#allocation5], 0
    %s16 = scalar_lea.sflag [#allocation5], 1
    %17 = vsyncpa %s16, 0
    %18 = vsyncpa [#allocation8], 0
    %s19 = scalar_lea.sflag [#allocation8], 1
    %20 = vsyncpa %s19, 0
    %21 = vsyncpa [#allocation11], 0
    %22 = vsyncpa [#allocation6], 0
    %s23 = scalar_lea.sflag [#allocation6], 1
    %24 = vsyncpa %s23, 0
    loop: start=0, step=1, limit=38
    $region2: #{tpu_custom_call.1} parent=1 // loop_pre_header
      _
    $region3: #{tpu_custom_call.1} parent=1 // loop_header
      %s26 = sphi 0, %s30
      %p27 = scmp.ge.s32.totalorder %s26, 38
      %s33 = sphi 0, %s45
      %s34 = sphi 0, %s41
      %s35 = sphi 0, %s33
      %s36 = sphi 0, %s34
      %s37 = sphi 0, %s35
      %s38 = sphi 0, %s36
      %s52 = sphi 0, %s54
      %s55 = sphi 0, %s52
      %s56 = sphi 0, %s55
      %s72 = sphi 0, %s56
      %s90 = sphi 0, %s92
      %s93 = sphi 0, %s90
      %s94 = sphi 0, %s93
      %s110 = sphi 0, %s94
      %s128 = sphi 0, %s130
      %s131 = sphi 0, %s128
      %s132 = sphi 0, %s131
      %s148 = sphi 0, %s132
      %s152 = sphi 0, %s152
      %s154 = sphi 0, %s152
      %s155 = sphi 0, %s154
      %s169 = sphi 0, %s155
      %s173 = sphi 0, %s173
      %s175 = sphi 0, %s173
      %s176 = sphi 0, %s175
      %s190 = sphi 0, %s176
      %s198 = sphi 0, %s200
      %s201 = sphi 0, %s198
      %s202 = sphi 0, %s201
      %s218 = sphi 0, %s202
    $region4: #{tpu_custom_call.1} parent=1 // loop_header_branch
      %29 = sbr.rel (%p27) target = $region8
    $region5: #{tpu_custom_call.1} parent=1 // loop_body
      %s31 = ssub.s32 %s26, 1
      %s32 = ssub.s32 %s26, 2
      %s39 = sadd.s32 1, %s34
      %p40 = scmp.ge.s32.totalorder %s39, 2
      %s41 = scalar_select %p40, 0, %s39
      %s42 = sadd.s32 1, %s33
      %s43 = scalar_select %p40, %s42, %s33
      %p44 = scmp.ge.s32.totalorder %s43, 18
      %s45 = scalar_select %p44, 0, %s43
      %s46 = sld [smem:[#allocation3 + %s33]]
      %s47 = sld [smem:[#allocation3 + %s45]]
      %s48 = ssub.s32 %s46, %s47
      %s49 = ssub.s32 %s34, %s41
      %s50 = sor.u32 %s48, %s49
      %p51 = scmp.eq.s32.totalorder %s50, 0
      %s53 = sadd.s32 %s52, 1
      %s54 = scalar_select %p51, %s52, %s53
      %p57 = pneg %p51
      %p58 = scmp.eq.s32.totalorder %s26, 35
      %p59 = por %p57, %p58
      %p60 = scmp.ne.s32.totalorder %s52, %s55
      %p61 = scmp.eq.s32.totalorder %s26, 0
      %p62 = por %p60, %p61
      %p63 = scmp.ne.s32.totalorder %s52, %s55
      %p64 = scmp.eq.s32.totalorder %s31, 35
      %p65 = por %p63, %p64
      %p66 = scmp.ne.s32.totalorder %s55, %s56
      %p67 = scmp.eq.s32.totalorder %s31, 0
      %p68 = por %p66, %p67
      %p69 = scmp.ne.s32.totalorder %s55, %s56
      %p70 = scmp.eq.s32.totalorder %s32, 35
      %p71 = por %p69, %p70
      %p73 = scmp.ne.s32.totalorder %s56, %s72
      %p74 = scmp.eq.s32.totalorder %s32, 0
      %p75 = por %p73, %p74
      %s76 = sld [smem:[#allocation3 + %s33]]
      %s77 = smul.u32 %s34, 4
      %s78 = ssub.s32 %s77, 1
      %p79 = scmp.gt.s32.totalorder %s78, 0
      %s80 = scalar_select %p79, %s78, 0
      %s81 = sld [smem:[#allocation3 + %s45]]
      %s82 = smul.u32 %s41, 4
      %s83 = ssub.s32 %s82, 1
      %p84 = scmp.gt.s32.totalorder %s83, 0
      %s85 = scalar_select %p84, %s83, 0
      %s86 = ssub.s32 %s76, %s81
      %s87 = ssub.s32 %s80, %s85
      %s88 = sor.u32 %s86, %s87
      %p89 = scmp.eq.s32.totalorder %s88, 0
      %s91 = sadd.s32 %s90, 1
      %s92 = scalar_select %p89, %s90, %s91
      %p95 = pneg %p89
      %p96 = scmp.eq.s32.totalorder %s26, 35
      %p97 = por %p95, %p96
      %p98 = scmp.ne.s32.totalorder %s90, %s93
      %p99 = scmp.eq.s32.totalorder %s26, 0
      %p100 = por %p98, %p99
      %p101 = scmp.ne.s32.totalorder %s90, %s93
      %p102 = scmp.eq.s32.totalorder %s31, 35
      %p103 = por %p101, %p102
      %p104 = scmp.ne.s32.totalorder %s93, %s94
      %p105 = scmp.eq.s32.totalorder %s31, 0
      %p106 = por %p104, %p105
      %p107 = scmp.ne.s32.totalorder %s93, %s94
      %p108 = scmp.eq.s32.totalorder %s32, 35
      %p109 = por %p107, %p108
      %p111 = scmp.ne.s32.totalorder %s94, %s110
      %p112 = scmp.eq.s32.totalorder %s32, 0
      %p113 = por %p111, %p112
      %s114 = sld [smem:[#allocation3 + %s33]]
      %s115 = sadd.s32 %s34, 1
      %s116 = smul.u32 %s115, 4
      %p117 = scmp.lt.s32.totalorder %s116, 7
      %s118 = scalar_select %p117, %s116, 7
      %s119 = sld [smem:[#allocation3 + %s45]]
      %s120 = sadd.s32 %s41, 1
      %s121 = smul.u32 %s120, 4
      %p122 = scmp.lt.s32.totalorder %s121, 7
      %s123 = scalar_select %p122, %s121, 7
      %s124 = ssub.s32 %s114, %s119
      %s125 = ssub.s32 %s118, %s123
      %s126 = sor.u32 %s124, %s125
      %p127 = scmp.eq.s32.totalorder %s126, 0
      %s129 = sadd.s32 %s128, 1
      %s130 = scalar_select %p127, %s128, %s129
      %p133 = pneg %p127
      %p134 = scmp.eq.s32.totalorder %s26, 35
      %p135 = por %p133, %p134
      %p136 = scmp.ne.s32.totalorder %s128, %s131
      %p137 = scmp.eq.s32.totalorder %s26, 0
      %p138 = por %p136, %p137
      %p139 = scmp.ne.s32.totalorder %s128, %s131
      %p140 = scmp.eq.s32.totalorder %s31, 35
      %p141 = por %p139, %p140
      %p142 = scmp.ne.s32.totalorder %s131, %s132
      %p143 = scmp.eq.s32.totalorder %s31, 0
      %p144 = por %p142, %p143
      %p145 = scmp.ne.s32.totalorder %s131, %s132
      %p146 = scmp.eq.s32.totalorder %s32, 35
      %p147 = por %p145, %p146
      %p149 = scmp.ne.s32.totalorder %s132, %s148
      %p150 = scmp.eq.s32.totalorder %s32, 0
      %p151 = por %p149, %p150
      %s153 = sadd.s32 %s152, 1
      %p156 = scmp.eq.s32.totalorder %s26, 35
      %p157 = scmp.ne.s32.totalorder %s152, %s154
      %p158 = scmp.eq.s32.totalorder %s26, 0
      %p159 = por %p157, %p158
      %p160 = scmp.ne.s32.totalorder %s152, %s154
      %p161 = scmp.eq.s32.totalorder %s31, 35
      %p162 = por %p160, %p161
      %p163 = scmp.ne.s32.totalorder %s154, %s155
      %p164 = scmp.eq.s32.totalorder %s31, 0
      %p165 = por %p163, %p164
      %p166 = scmp.ne.s32.totalorder %s154, %s155
      %p167 = scmp.eq.s32.totalorder %s32, 35
      %p168 = por %p166, %p167
      %p170 = scmp.ne.s32.totalorder %s155, %s169
      %p171 = scmp.eq.s32.totalorder %s32, 0
      %p172 = por %p170, %p171
      %s174 = sadd.s32 %s173, 1
      %p177 = scmp.eq.s32.totalorder %s26, 35
      %p178 = scmp.ne.s32.totalorder %s173, %s175
      %p179 = scmp.eq.s32.totalorder %s26, 0
      %p180 = por %p178, %p179
      %p181 = scmp.ne.s32.totalorder %s173, %s175
      %p182 = scmp.eq.s32.totalorder %s31, 35
      %p183 = por %p181, %p182
      %p184 = scmp.ne.s32.totalorder %s175, %s176
      %p185 = scmp.eq.s32.totalorder %s31, 0
      %p186 = por %p184, %p185
      %p187 = scmp.ne.s32.totalorder %s175, %s176
      %p188 = scmp.eq.s32.totalorder %s32, 35
      %p189 = por %p187, %p188
      %p191 = scmp.ne.s32.totalorder %s176, %s190
      %p192 = scmp.eq.s32.totalorder %s32, 0
      %p193 = por %p191, %p192
      %s194 = ssub.s32 %s33, %s45
      %s195 = ssub.s32 %s34, %s41
      %s196 = sor.u32 %s194, %s195
      %p197 = scmp.eq.s32.totalorder %s196, 0
      %s199 = sadd.s32 %s198, 1
      %s200 = scalar_select %p197, %s198, %s199
      %p203 = pneg %p197
      %p204 = scmp.eq.s32.totalorder %s26, 35
      %p205 = por %p203, %p204
      %p206 = scmp.ne.s32.totalorder %s198, %s201
      %p207 = scmp.eq.s32.totalorder %s26, 0
      %p208 = por %p206, %p207
      %p209 = scmp.ne.s32.totalorder %s198, %s201
      %p210 = scmp.eq.s32.totalorder %s31, 35
      %p211 = por %p209, %p210
      %p212 = scmp.ne.s32.totalorder %s201, %s202
      %p213 = scmp.eq.s32.totalorder %s31, 0
      %p214 = por %p212, %p213
      %p215 = scmp.ne.s32.totalorder %s201, %s202
      %p216 = scmp.eq.s32.totalorder %s32, 35
      %p217 = por %p215, %p216
      %p219 = scmp.ne.s32.totalorder %s202, %s218
      %p220 = scmp.eq.s32.totalorder %s32, 0
      %p221 = por %p219, %p220
      %p222 = scmp.le.s32.totalorder 1, %s26
      %p223 = scmp.lt.s32.totalorder %s26, 37
      %p224 = pnand %p222, %p223
      %p225 = pneg %p224
      // Predicated region
      $region9: #{tpu_custom_call.1} parent=5 // pred_check
        _
      $region10: #{tpu_custom_call.1} parent=5 // pred_check_branch
        %227 = sbr.rel (%p224) target = $region12
      $region11: #{tpu_custom_call.1} parent=5 // pred_region
        %s228 = ssub.s32 %s26, 1
        // Predicated region
        $region13: #{tpu_custom_call.1} parent=11 // pred_check
          %p229 = pneg %p165
        $region14: #{tpu_custom_call.1} parent=11 // pred_check_branch
          %231 = sbr.rel (%p229) target = $region16
        $region15: #{tpu_custom_call.1} parent=11 // pred_region
          %s233 = ssub.s32 16384, 16384
          %234 = vsyncadd [#allocation11], %s233
          %s235 = sshll.u32 [#allocation10], 4
          %s236 = int_to_ptr.vmem [resolvable:$true] %s235
          %241 = dma.hbm_to_vmem [thread:$0]  %s4, 16384, %s236, [#allocation11], 64, 64, 4
        $region16: #{tpu_custom_call.1} parent=11 // pred_fallthru
          _
        // Predicated region
        $region17: #{tpu_custom_call.1} parent=11 // pred_check
          %p242 = pneg %p186
        $region18: #{tpu_custom_call.1} parent=11 // pred_check_branch
          %244 = sbr.rel (%p242) target = $region20
        $region19: #{tpu_custom_call.1} parent=11 // pred_region
          %s246 = ssub.s32 16, 16
          %247 = vsyncadd [#allocation11], %s246
          %s249 = sshll.u32 [#allocation12], 4
          %s250 = int_to_ptr.vmem [resolvable:$true] %s249
          %252 = dma.hbm_to_vmem [thread:$0]  %s5, 16, %s250, [#allocation11]
        $region20: #{tpu_custom_call.1} parent=11 // pred_fallthru
          _
      $region12: #{tpu_custom_call.1} parent=5 // pred_fallthru
        _
      %p253 = scmp.lt.s32.totalorder %s26, 36
      // Predicated region
      $region21: #{tpu_custom_call.1} parent=5 // pred_check
        %p254 = pneg %p253
      $region22: #{tpu_custom_call.1} parent=5 // pred_check_branch
        %256 = sbr.rel (%p254) target = $region24
      $region23: #{tpu_custom_call.1} parent=5 // pred_region
        // Predicated region
        $region25: #{tpu_custom_call.1} parent=23 // pred_check
          %p257 = pneg %p62
        $region26: #{tpu_custom_call.1} parent=23 // pred_check_branch
          %259 = sbr.rel (%p257) target = $region28
        $region27: #{tpu_custom_call.1} parent=23 // pred_region
          %s260 = sand.u32 %s52, 1
          %s261 = scalar_lea.sflag [#allocation5], %s260
          %s262 = sand.u32 %s52, 1
          %s263 = smul.addr %s262, 32
          %s264 = scalar_lea.vmem [#allocation4], %s263
          %s265 = sld [smem:[#allocation3 + %s33]]
          %s266 = smul.u32 4, %s34
          %s268 = ssub.s32 512, 512
          %269 = vsyncadd %s261, %s268
          %s270 = smul.addr %s265, 8
          %s271 = sadd.s32 %s266, %s270
          %s272 = smul.addr %s271, 128
          %s273 = scalar_lea.hbm %s1, %s272
          %s274 = sshll.u32 %s264, 4
          %s275 = int_to_ptr.vmem [resolvable:$true] %s274
          %280 = dma.hbm_to_vmem [thread:$0]  %s273, 512, %s275, %s261, 128, 128, 8
        $region28: #{tpu_custom_call.1} parent=23 // pred_fallthru
          _
        // Predicated region
        $region29: #{tpu_custom_call.1} parent=23 // pred_check
          %p281 = pneg %p100
        $region30: #{tpu_custom_call.1} parent=23 // pred_check_branch
          %283 = sbr.rel (%p281) target = $region32
        $region31: #{tpu_custom_call.1} parent=23 // pred_region
          %s284 = sand.u32 %s26, 1
          %s285 = scalar_lea.sflag [#allocation8], %s284
          %s286 = sand.u32 %s90, 1
          %s287 = smul.addr %s286, 8
          %s288 = scalar_lea.vmem [#allocation7], %s287
          %s289 = sld [smem:[#allocation3 + %s33]]
          %s290 = smul.u32 %s34, 4
          %s291 = ssub.s32 %s290, 1
          %p292 = scmp.gt.s32.totalorder %s291, 0
          %s293 = scalar_select %p292, %s291, 0
          %s295 = ssub.s32 128, 128
          %296 = vsyncadd %s285, %s295
          %s297 = smul.addr %s289, 8
          %s298 = sadd.s32 %s293, %s297
          %s299 = smul.addr %s298, 128
          %s300 = scalar_lea.hbm %s2, %s299
          %s302 = sshll.u32 %s288, 4
          %s303 = int_to_ptr.vmem [resolvable:$true] %s302
          %305 = dma.hbm_to_vmem [thread:$0]  %s300, 128, %s303, %s285
        $region32: #{tpu_custom_call.1} parent=23 // pred_fallthru
          _
        // Predicated region
        $region33: #{tpu_custom_call.1} parent=23 // pred_check
          %p306 = pneg %p138
        $region34: #{tpu_custom_call.1} parent=23 // pred_check_branch
          %308 = sbr.rel (%p306) target = $region36
        $region35: #{tpu_custom_call.1} parent=23 // pred_region
          %s309 = sand.u32 %s26, 1
          %s310 = scalar_lea.sflag [#allocation8], %s309
          %s311 = sand.u32 %s128, 1
          %s312 = smul.addr %s311, 8
          %s313 = scalar_lea.vmem [#allocation9], %s312
          %s314 = sld [smem:[#allocation3 + %s33]]
          %s315 = sadd.s32 %s34, 1
          %s316 = smul.u32 %s315, 4
          %p317 = scmp.lt.s32.totalorder %s316, 7
          %s318 = scalar_select %p317, %s316, 7
          %s320 = ssub.s32 128, 128
          %321 = vsyncadd %s310, %s320
          %s322 = smul.addr %s314, 8
          %s323 = sadd.s32 %s318, %s322
          %s324 = smul.addr %s323, 128
          %s325 = scalar_lea.hbm %s3, %s324
          %s327 = sshll.u32 %s313, 4
          %s328 = int_to_ptr.vmem [resolvable:$true] %s327
          %330 = dma.hbm_to_vmem [thread:$0]  %s325, 128, %s328, %s310
        $region36: #{tpu_custom_call.1} parent=23 // pred_fallthru
          _
      $region24: #{tpu_custom_call.1} parent=5 // pred_fallthru
        _
      %p331 = scmp.le.s32.totalorder 1, %s26
      %p332 = scmp.lt.s32.totalorder %s26, 37
      %p333 = pnand %p331, %p332
      %p334 = pneg %p333
      // Predicated region
      $region37: #{tpu_custom_call.1} parent=5 // pred_check
        _
      $region38: #{tpu_custom_call.1} parent=5 // pred_check_branch
        %336 = sbr.rel (%p333) target = $region40
      $region39: #{tpu_custom_call.1} parent=5 // pred_region
        %s337 = ssub.s32 %s26, 1
        %s338 = sand.u32 %s55, 1
        %s339 = scalar_lea.sflag [#allocation5], %s338
        %s340 = sand.u32 %s55, 1
        %s341 = smul.addr %s340, 32
        %s342 = scalar_lea.vmem [#allocation4], %s341
        // Predicated region
        $region41: #{tpu_custom_call.1} parent=39 // pred_check
          %p343 = pneg %p68
        $region42: #{tpu_custom_call.1} parent=39 // pred_check_branch
          %345 = sbr.rel (%p343) target = $region44
        $region43: #{tpu_custom_call.1} parent=39 // pred_region
          %346 = dma.done %s339, 512
        $region44: #{tpu_custom_call.1} parent=39 // pred_fallthru
          _
        %s347 = sand.u32 %s31, 1
        %s348 = scalar_lea.sflag [#allocation8], %s347
        %s349 = sand.u32 %s93, 1
        %s350 = smul.addr %s349, 8
        %s351 = scalar_lea.vmem [#allocation7], %s350
        // Predicated region
        $region45: #{tpu_custom_call.1} parent=39 // pred_check
          %p352 = pneg %p106
        $region46: #{tpu_custom_call.1} parent=39 // pred_check_branch
          %354 = sbr.rel (%p352) target = $region48
        $region47: #{tpu_custom_call.1} parent=39 // pred_region
          %355 = dma.done %s348, 128
        $region48: #{tpu_custom_call.1} parent=39 // pred_fallthru
          _
        %s356 = sand.u32 %s31, 1
        %s357 = scalar_lea.sflag [#allocation8], %s356
        %s358 = sand.u32 %s131, 1
        %s359 = smul.addr %s358, 8
        %s360 = scalar_lea.vmem [#allocation9], %s359
        // Predicated region
        $region49: #{tpu_custom_call.1} parent=39 // pred_check
          %p361 = pneg %p144
        $region50: #{tpu_custom_call.1} parent=39 // pred_check_branch
          %363 = sbr.rel (%p361) target = $region52
        $region51: #{tpu_custom_call.1} parent=39 // pred_region
          %364 = dma.done %s357, 128
        $region52: #{tpu_custom_call.1} parent=39 // pred_fallthru
          _
        // Predicated region
        $region53: #{tpu_custom_call.1} parent=39 // pred_check
          %p365 = pneg %p165
        $region54: #{tpu_custom_call.1} parent=39 // pred_check_branch
          %367 = sbr.rel (%p365) target = $region56
        $region55: #{tpu_custom_call.1} parent=39 // pred_region
          %368 = dma.done [#allocation11], 16384
        $region56: #{tpu_custom_call.1} parent=39 // pred_fallthru
          _
        // Predicated region
        $region57: #{tpu_custom_call.1} parent=39 // pred_check
          %p369 = pneg %p186
        $region58: #{tpu_custom_call.1} parent=39 // pred_check_branch
          %371 = sbr.rel (%p369) target = $region60
        $region59: #{tpu_custom_call.1} parent=39 // pred_region
          %372 = dma.done [#allocation11], 16
        $region60: #{tpu_custom_call.1} parent=39 // pred_fallthru
          _
        %s373 = sand.u32 %s55, 1
        %s374 = scalar_lea.sflag [#allocation5], %s373
        %s375 = sand.u32 %s55, 1
        %s376 = smul.addr %s375, 32
        %s377 = scalar_lea.vmem [#allocation4], %s376
        %p378 = pneg %p68
        %p379 = pneg %p65
        %s380 = sand.u32 %s31, 1
        %s381 = scalar_lea.sflag [#allocation8], %s380
        %s382 = sand.u32 %s93, 1
        %s383 = smul.addr %s382, 8
        %s384 = scalar_lea.vmem [#allocation7], %s383
        %p385 = pneg %p106
        %p386 = pneg %p103
        %s387 = sand.u32 %s31, 1
        %s388 = scalar_lea.sflag [#allocation8], %s387
        %s389 = sand.u32 %s131, 1
        %s390 = smul.addr %s389, 8
        %s391 = scalar_lea.vmem [#allocation9], %s390
        %p392 = pneg %p144
        %p393 = pneg %p141
        %p394 = pneg %p165
        %p395 = pneg %p162
        %p396 = pneg %p186
        %p397 = pneg %p183
        %p398 = pneg %p214
        %p399 = pneg %p211
        %s400 = sand.u32 %s201, 1
        %s401 = scalar_lea.sflag [#allocation6], %s400
        %s402 = sand.u32 %s201, 1
        %s403 = smul.addr %s402, 128
        %s404 = scalar_lea.vmem [#allocation13], %s403
        %s405 = sld [smem:[#allocation3 + %s35]]
        %s406 = smul.u32 4, %s36
        %s407 = sld [smem:[#allocation3 + %s35]]
        %s408 = smul.u32 %s36, 4
        %s409 = ssub.s32 %s408, 1
        %p410 = scmp.gt.s32.totalorder %s409, 0
        %s411 = scalar_select %p410, %s409, 0
        %s412 = sld [smem:[#allocation3 + %s35]]
        %s413 = sadd.s32 %s36, 1
        %s414 = smul.u32 %s413, 4
        %p415 = scmp.lt.s32.totalorder %s414, 7
        %s416 = scalar_select %p415, %s414, 7
        %s417 = smul.u32 4, %s36
        %v419 = vld [vmem:[%s351] sm:$0xff]
        %p420 = scmp.gt.s32.totalorder %s36, 0
        %s421 = scalar_select %p420, 1, 0
        %s422 = scvt.s32.f32 %s421
        %v423 = vstv %s422
        %v424 = vmul.f32 %v419, %v423
        %v425 = vpack.c.bf16 %v424, %v424
        %v426 = vld [vmem:[%s360] sm:$0xff]
        %p427 = scmp.lt.s32.totalorder %s36, 1
        %s428 = scalar_select %p427, 1, 0
        %s429 = scvt.s32.f32 %s428
        %v430 = vstv %s429
        %v431 = vmul.f32 %v426, %v430
        %v432 = vpack.c.bf16 %v431, %v431
        %v433 = vld [vmem:[%s342] sm:$0xff]
        %v434 = vld [vmem:[%s342 + $0x8] sm:$0xff]
        %v435 = vld [vmem:[%s342 + $0x10] sm:$0xff]
        %v436 = vld [vmem:[%s342 + $0x18] sm:$0xff]
        %v437 = vpack.c.bf16 %v433, %v433
        %v438 = vpack.c.bf16 %v434, %v434
        %v439 = vpack.c.bf16 %v435, %v435
        %v440 = vpack.c.bf16 %v436, %v436
        %v442 = vshrl.u32 %v425, 16
        %v444 = vrot.slane %v442, 7
        %v445 = vshll.u32 %v425, 16
        %v447 = vor.u32 %v444, %v445
        %v449 = vshrl.u32 %v437, 16
        %v451 = vrot.slane %v449, 7
        %v452 = vshll.u32 %v437, 16
        %v454 = vor.u32 %v451, %v452
        %v456 = vshrl.u32 %v438, 16
        %v458 = vrot.slane %v456, 7
        %v459 = vshll.u32 %v438, 16
        %v461 = vor.u32 %v458, %v459
        %v463 = vshrl.u32 %v439, 16
        %v465 = vrot.slane %v463, 7
        %v466 = vshll.u32 %v439, 16
        %v468 = vor.u32 %v465, %v466
        %v470 = vshrl.u32 %v440, 16
        %v472 = vrot.slane %v470, 7
        %v473 = vshll.u32 %v440, 16
        %v475 = vor.u32 %v472, %v473
        %v477 = vshrl.u32 %v432, 16
        %v479 = vrot.slane %v477, 7
        %v480 = vshll.u32 %v432, 16
        %v482 = vor.u32 %v479, %v480
        %vm489 = vcmask 1040384
        %vm490 = vsmask.f32 256
        %vm491 = vmand %vm489, %vm490
        %v492 = vsel %vm491, 0, %v447
        %v493 = vsel %vm491, 0, %v454
        %v494 = vsel %vm491, 0, %v461
        %v495 = vsel %vm491, 0, %v468
        %v496 = vsel %vm491, 0, %v475
        %v497 = vsel %vm491, 0, %v482
        %v498 = vrot.slane %v445, 1
        %v499 = vor.u32 %v442, %v498
        %v500 = vrot.slane %v452, 1
        %v501 = vor.u32 %v449, %v500
        %v502 = vrot.slane %v459, 1
        %v503 = vor.u32 %v456, %v502
        %v504 = vrot.slane %v466, 1
        %v505 = vor.u32 %v463, %v504
        %v506 = vrot.slane %v473, 1
        %v507 = vor.u32 %v470, %v506
        %v508 = vrot.slane %v480, 1
        %v509 = vor.u32 %v477, %v508
        %vm516 = vcmask 1043456
        %vm517 = vsmask.f32 3328
        %vm518 = vmand %vm516, %vm517
        %v519 = vsel %vm518, %v499, 0
        %v520 = vsel %vm518, %v501, 0
        %v521 = vsel %vm518, %v503, 0
        %v522 = vsel %vm518, %v505, 0
        %v523 = vsel %vm518, %v507, 0
        %v524 = vsel %vm518, %v509, 0
        %v525 = vld [vmem:[#allocation12] sm:$0x1]
        %v534 = vunpack.c.l.b16 %v492
        %v535 = vunpack.c.l.b16 %v425
        %v536 = vunpack.c.l.b16 %v493
        %v537 = vunpack.c.l.b16 %v437
        %v538 = vunpack.c.l.b16 %v494
        %v539 = vunpack.c.l.b16 %v438
        %v540 = vunpack.c.l.b16 %v495
        %v541 = vunpack.c.l.b16 %v439
        %v542 = vld [vmem:[#allocation10] sm:$0xf]
        %v543 = vld [vmem:[#allocation10 + $0x4] sm:$0xf]
        %v544 = vld [vmem:[#allocation10 + $0x8] sm:$0xf]
        %v545 = vld [vmem:[#allocation10 + $0xc] sm:$0xf]
        %v546 = vld [vmem:[#allocation10 + $0x10] sm:$0xf]
        %v547 = vld [vmem:[#allocation10 + $0x14] sm:$0xf]
        %v548 = vld [vmem:[#allocation10 + $0x18] sm:$0xf]
        %v549 = vld [vmem:[#allocation10 + $0x1c] sm:$0xf]
        %v550 = vld [vmem:[#allocation10 + $0x20] sm:$0xf]
        %v551 = vld [vmem:[#allocation10 + $0x24] sm:$0xf]
        %v552 = vld [vmem:[#allocation10 + $0x28] sm:$0xf]
        %v553 = vld [vmem:[#allocation10 + $0x2c] sm:$0xf]
        %v554 = vld [vmem:[#allocation10 + $0x30] sm:$0xf]
        %v555 = vld [vmem:[#allocation10 + $0x34] sm:$0xf]
        %v556 = vld [vmem:[#allocation10 + $0x38] sm:$0xf]
        %v557 = vld [vmem:[#allocation10 + $0x3c] sm:$0xf]
        %v558 = vld [vmem:[#allocation10 + $0x40] sm:$0xf]
        %v559 = vld [vmem:[#allocation10 + $0x44] sm:$0xf]
        %v560 = vld [vmem:[#allocation10 + $0x48] sm:$0xf]
        %v561 = vld [vmem:[#allocation10 + $0x4c] sm:$0xf]
        %v562 = vld [vmem:[#allocation10 + $0x50] sm:$0xf]
        %v563 = vld [vmem:[#allocation10 + $0x54] sm:$0xf]
        %v564 = vld [vmem:[#allocation10 + $0x58] sm:$0xf]
        %v565 = vld [vmem:[#allocation10 + $0x5c] sm:$0xf]
        %v566 = vld [vmem:[#allocation10 + $0x60] sm:$0xf]
        %v567 = vld [vmem:[#allocation10 + $0x64] sm:$0xf]
        %v568 = vld [vmem:[#allocation10 + $0x68] sm:$0xf]
        %v569 = vld [vmem:[#allocation10 + $0x6c] sm:$0xf]
        %v570 = vld [vmem:[#allocation10 + $0x70] sm:$0xf]
        %v571 = vld [vmem:[#allocation10 + $0x74] sm:$0xf]
        %v572 = vld [vmem:[#allocation10 + $0x78] sm:$0xf]
        %v573 = vld [vmem:[#allocation10 + $0x7c] sm:$0xf]
        %v574 = vpack.c.b16 %v536, %v534
        %v575 = vpack.c.b16 %v537, %v535
        %v576 = vpack.c.b16 %v540, %v538
        %v577 = vpack.c.b16 %v541, %v539
        %v614 = vunpack.c.l.b16 %v542
        %v615 = vunpack.c.l.b16 %v543
        %v616 = vunpack.c.l.b16 %v544
        %v617 = vunpack.c.l.b16 %v545
        %v618 = vunpack.c.l.b16 %v546
        %v619 = vunpack.c.l.b16 %v547
        %v620 = vunpack.c.l.b16 %v548
        %v621 = vunpack.c.l.b16 %v549
        %v622 = vunpack.c.l.b16 %v550
        %v623 = vunpack.c.l.b16 %v551
        %v624 = vunpack.c.l.b16 %v552
        %v625 = vunpack.c.l.b16 %v553
        %v626 = vunpack.c.l.b16 %v554
        %v627 = vunpack.c.l.b16 %v555
        %v628 = vunpack.c.l.b16 %v556
        %v629 = vunpack.c.l.b16 %v557
        %v630 = vunpack.c.l.b16 %v558
        %v631 = vunpack.c.l.b16 %v559
        %v632 = vunpack.c.l.b16 %v560
        %v633 = vunpack.c.l.b16 %v561
        %v634 = vunpack.c.l.b16 %v562
        %v635 = vunpack.c.l.b16 %v563
        %v636 = vunpack.c.l.b16 %v564
        %v637 = vunpack.c.l.b16 %v565
        %v638 = vunpack.c.l.b16 %v566
        %v639 = vunpack.c.l.b16 %v567
        %v640 = vunpack.c.l.b16 %v568
        %v641 = vunpack.c.l.b16 %v569
        %v642 = vunpack.c.l.b16 %v570
        %v643 = vunpack.c.l.b16 %v571
        %v644 = vunpack.c.l.b16 %v572
        %v645 = vunpack.c.l.b16 %v573
        %v646 = vpack.c.b16 %v615, %v614
        %v647 = vpack.c.b16 %v617, %v616
        %v648 = vpack.c.b16 %v619, %v618
        %v649 = vpack.c.b16 %v621, %v620
        %v650 = vpack.c.b16 %v623, %v622
        %v651 = vpack.c.b16 %v625, %v624
        %v652 = vpack.c.b16 %v627, %v626
        %v653 = vpack.c.b16 %v629, %v628
        %v654 = vpack.c.b16 %v631, %v630
        %v655 = vpack.c.b16 %v633, %v632
        %v656 = vpack.c.b16 %v635, %v634
        %v657 = vpack.c.b16 %v637, %v636
        %v658 = vpack.c.b16 %v639, %v638
        %v659 = vpack.c.b16 %v641, %v640
        %v660 = vpack.c.b16 %v643, %v642
        %v661 = vpack.c.b16 %v645, %v644
        %678 = vmatprep.subr.bf16.mxu0 0
        %679 = vmatpush1.bf16.msra.mxu0 %v646
        %680 = vmatprep.subr.bf16.mxu0 0
        %681 = vmatpush1.bf16.msra.mxu0 %v647
        %682 = vmatprep.subr.bf16.mxu0 0
        %683 = vmatpush1.bf16.msra.mxu0 %v648
        %684 = vmatprep.subr.bf16.mxu0 0
        %685 = vmatpush1.bf16.msra.mxu0 %v649
        %686 = vmatprep.subr.bf16.mxu0 0
        %687 = vmatpush1.bf16.msra.mxu0 %v650
        %688 = vmatprep.subr.bf16.mxu0 0
        %689 = vmatpush1.bf16.msra.mxu0 %v651
        %690 = vmatprep.subr.bf16.mxu0 0
        %691 = vmatpush1.bf16.msra.mxu0 %v652
        %692 = vmatprep.subr.bf16.mxu0 0
        %693 = vmatpush1.bf16.msra.mxu0 %v653
        %694 = vmatprep.subr.bf16.mxu0 0
        %695 = vmatpush1.bf16.msra.mxu0 %v654
        %696 = vmatprep.subr.bf16.mxu0 0
        %697 = vmatpush1.bf16.msra.mxu0 %v655
        %698 = vmatprep.subr.bf16.mxu0 0
        %699 = vmatpush1.bf16.msra.mxu0 %v656
        %700 = vmatprep.subr.bf16.mxu0 0
        %701 = vmatpush1.bf16.msra.mxu0 %v657
        %702 = vmatprep.subr.bf16.mxu0 0
        %703 = vmatpush1.bf16.msra.mxu0 %v658
        %704 = vmatprep.subr.bf16.mxu0 0
        %705 = vmatpush1.bf16.msra.mxu0 %v659
        %706 = vmatprep.subr.bf16.mxu0 0
        %707 = vmatpush1.bf16.msra.mxu0 %v660
        %708 = vmatprep.subr.bf16.mxu0 0
        %709 = vmatpush1.bf16.msra.mxu0 %v661
        %710 = vmatprep.mubr.bf16.mxu0 %v575
        %711 = vmatmul.mubr.bf16.gmra.mrb[0].mxu0 %v574
        %v712 = vpop.f32.mrb[0].mxu0
        %v713 = vadd.f32 0.0, %v712
        %v714 = vpop.f32.mrb[0].mxu0
        %v715 = vpop.f32.mrb[0].mxu0
        %v716 = vadd.f32 0.0, %v715
        %v717 = vpop.f32.mrb[0].mxu0
        %718 = vmatprep.mubr.bf16.mxu0 %v577
        %719 = vmatmul.mubr.bf16.gmra.mrb[0].mxu0 %v576
        %v720 = vpop.f32.mrb[0].mxu0
        %v721 = vadd.f32 0.0, %v720
        %v722 = vpop.f32.mrb[0].mxu0
        %v723 = vpop.f32.mrb[0].mxu0
        %v724 = vadd.f32 0.0, %v723
        %v725 = vpop.f32.mrb[0].mxu0
        %726 = vdwg.mxu0
        %v728 = vlaneseq
        %v729 = vshrl.u32 %v728, 7
        %v730 = vsub.s32 0, %v729
        %v731 = vrot.slane %v525, %v730
        %v733 = vadd.f32 %v731, %v713
        %v734 = vadd.f32 %v731, %v716
        %v735 = vadd.f32 %v731, %v721
        %v736 = vadd.f32 %v731, %v724
        %v739 = vunpack.c.l.b16 %v496
        %v740 = vunpack.c.l.b16 %v440
        %s741 = scalar_lea.vmem [#allocation10], 128
        %v742 = vld [vmem:[%s741] sm:$0xf]
        %v743 = vld [vmem:[%s741 + $0x4] sm:$0xf]
        %v744 = vld [vmem:[%s741 + $0x8] sm:$0xf]
        %v745 = vld [vmem:[%s741 + $0xc] sm:$0xf]
        %v746 = vld [vmem:[%s741 + $0x10] sm:$0xf]
        %v747 = vld [vmem:[%s741 + $0x14] sm:$0xf]
        %v748 = vld [vmem:[%s741 + $0x18] sm:$0xf]
        %v749 = vld [vmem:[%s741 + $0x1c] sm:$0xf]
        %v750 = vld [vmem:[%s741 + $0x20] sm:$0xf]
        %v751 = vld [vmem:[%s741 + $0x24] sm:$0xf]
        %v752 = vld [vmem:[%s741 + $0x28] sm:$0xf]
        %v753 = vld [vmem:[%s741 + $0x2c] sm:$0xf]
        %v754 = vld [vmem:[%s741 + $0x30] sm:$0xf]
        %v755 = vld [vmem:[%s741 + $0x34] sm:$0xf]
        %v756 = vld [vmem:[%s741 + $0x38] sm:$0xf]
        %v757 = vld [vmem:[%s741 + $0x3c] sm:$0xf]
        %v758 = vld [vmem:[%s741 + $0x40] sm:$0xf]
        %v759 = vld [vmem:[%s741 + $0x44] sm:$0xf]
        %v760 = vld [vmem:[%s741 + $0x48] sm:$0xf]
        %v761 = vld [vmem:[%s741 + $0x4c] sm:$0xf]
        %v762 = vld [vmem:[%s741 + $0x50] sm:$0xf]
        %v763 = vld [vmem:[%s741 + $0x54] sm:$0xf]
        %v764 = vld [vmem:[%s741 + $0x58] sm:$0xf]
        %v765 = vld [vmem:[%s741 + $0x5c] sm:$0xf]
        %v766 = vld [vmem:[%s741 + $0x60] sm:$0xf]
        %v767 = vld [vmem:[%s741 + $0x64] sm:$0xf]
        %v768 = vld [vmem:[%s741 + $0x68] sm:$0xf]
        %v769 = vld [vmem:[%s741 + $0x6c] sm:$0xf]
        %v770 = vld [vmem:[%s741 + $0x70] sm:$0xf]
        %v771 = vld [vmem:[%s741 + $0x74] sm:$0xf]
        %v772 = vld [vmem:[%s741 + $0x78] sm:$0xf]
        %v773 = vld [vmem:[%s741 + $0x7c] sm:$0xf]
        %v774 = vpack.c.b16 %v538, %v536
        %v775 = vpack.c.b16 %v539, %v537
        %v776 = vpack.c.b16 %v739, %v540
        %v777 = vpack.c.b16 %v740, %v541
        %v814 = vunpack.c.l.b16 %v742
        %v815 = vunpack.c.l.b16 %v743
        %v816 = vunpack.c.l.b16 %v744
        %v817 = vunpack.c.l.b16 %v745
        %v818 = vunpack.c.l.b16 %v746
        %v819 = vunpack.c.l.b16 %v747
        %v820 = vunpack.c.l.b16 %v748
        %v821 = vunpack.c.l.b16 %v749
        %v822 = vunpack.c.l.b16 %v750
        %v823 = vunpack.c.l.b16 %v751
        %v824 = vunpack.c.l.b16 %v752
        %v825 = vunpack.c.l.b16 %v753
        %v826 = vunpack.c.l.b16 %v754
        %v827 = vunpack.c.l.b16 %v755
        %v828 = vunpack.c.l.b16 %v756
        %v829 = vunpack.c.l.b16 %v757
        %v830 = vunpack.c.l.b16 %v758
        %v831 = vunpack.c.l.b16 %v759
        %v832 = vunpack.c.l.b16 %v760
        %v833 = vunpack.c.l.b16 %v761
        %v834 = vunpack.c.l.b16 %v762
        %v835 = vunpack.c.l.b16 %v763
        %v836 = vunpack.c.l.b16 %v764
        %v837 = vunpack.c.l.b16 %v765
        %v838 = vunpack.c.l.b16 %v766
        %v839 = vunpack.c.l.b16 %v767
        %v840 = vunpack.c.l.b16 %v768
        %v841 = vunpack.c.l.b16 %v769
        %v842 = vunpack.c.l.b16 %v770
        %v843 = vunpack.c.l.b16 %v771
        %v844 = vunpack.c.l.b16 %v772
        %v845 = vunpack.c.l.b16 %v773
        %v846 = vpack.c.b16 %v815, %v814
        %v847 = vpack.c.b16 %v817, %v816
        %v848 = vpack.c.b16 %v819, %v818
        %v849 = vpack.c.b16 %v821, %v820
        %v850 = vpack.c.b16 %v823, %v822
        %v851 = vpack.c.b16 %v825, %v824
        %v852 = vpack.c.b16 %v827, %v826
        %v853 = vpack.c.b16 %v829, %v828
        %v854 = vpack.c.b16 %v831, %v830
        %v855 = vpack.c.b16 %v833, %v832
        %v856 = vpack.c.b16 %v835, %v834
        %v857 = vpack.c.b16 %v837, %v836
        %v858 = vpack.c.b16 %v839, %v838
        %v859 = vpack.c.b16 %v841, %v840
        %v860 = vpack.c.b16 %v843, %v842
        %v861 = vpack.c.b16 %v845, %v844
        %878 = vmatprep.subr.bf16.mxu0 0
        %879 = vmatpush1.bf16.msra.mxu0 %v846
        %880 = vmatprep.subr.bf16.mxu0 0
        %881 = vmatpush1.bf16.msra.mxu0 %v847
        %882 = vmatprep.subr.bf16.mxu0 0
        %883 = vmatpush1.bf16.msra.mxu0 %v848
        %884 = vmatprep.subr.bf16.mxu0 0
        %885 = vmatpush1.bf16.msra.mxu0 %v849
        %886 = vmatprep.subr.bf16.mxu0 0
        %887 = vmatpush1.bf16.msra.mxu0 %v850
        %888 = vmatprep.subr.bf16.mxu0 0
        %889 = vmatpush1.bf16.msra.mxu0 %v851
        %890 = vmatprep.subr.bf16.mxu0 0
        %891 = vmatpush1.bf16.msra.mxu0 %v852
        %892 = vmatprep.subr.bf16.mxu0 0
        %893 = vmatpush1.bf16.msra.mxu0 %v853
        %894 = vmatprep.subr.bf16.mxu0 0
        %895 = vmatpush1.bf16.msra.mxu0 %v854
        %896 = vmatprep.subr.bf16.mxu0 0
        %897 = vmatpush1.bf16.msra.mxu0 %v855
        %898 = vmatprep.subr.bf16.mxu0 0
        %899 = vmatpush1.bf16.msra.mxu0 %v856
        %900 = vmatprep.subr.bf16.mxu0 0
        %901 = vmatpush1.bf16.msra.mxu0 %v857
        %902 = vmatprep.subr.bf16.mxu0 0
        %903 = vmatpush1.bf16.msra.mxu0 %v858
        %904 = vmatprep.subr.bf16.mxu0 0
        %905 = vmatpush1.bf16.msra.mxu0 %v859
        %906 = vmatprep.subr.bf16.mxu0 0
        %907 = vmatpush1.bf16.msra.mxu0 %v860
        %908 = vmatprep.subr.bf16.mxu0 0
        %909 = vmatpush1.bf16.msra.mxu0 %v861
        %910 = vmatprep.mubr.bf16.mxu0 %v775
        %911 = vmatmul.mubr.bf16.gmra.mrb[0].mxu0 %v774
        %v912 = vpop.f32.mrb[0].mxu0
        %v913 = vadd.f32 0.0, %v912
        %v914 = vpop.f32.mrb[0].mxu0
        %v915 = vpop.f32.mrb[0].mxu0
        %v916 = vadd.f32 0.0, %v915
        %v917 = vpop.f32.mrb[0].mxu0
        %918 = vmatprep.mubr.bf16.mxu0 %v777
        %919 = vmatmul.mubr.bf16.gmra.mrb[0].mxu0 %v776
        %v920 = vpop.f32.mrb[0].mxu0
        %v921 = vadd.f32 0.0, %v920
        %v922 = vpop.f32.mrb[0].mxu0
        %v923 = vpop.f32.mrb[0].mxu0
        %v924 = vadd.f32 0.0, %v923
        %v925 = vpop.f32.mrb[0].mxu0
        %926 = vdwg.mxu0
        %v927 = vadd.f32 %v733, %v913
        %v928 = vadd.f32 %v734, %v916
        %v929 = vadd.f32 %v735, %v921
        %v930 = vadd.f32 %v736, %v924
        %931 = vst [vmem:[%s404] sm:$0xff] %v927
        %932 = vst [vmem:[%s404 + $0x8] sm:$0xff] %v928
        %933 = vst [vmem:[%s404 + $0x10] sm:$0xff] %v929
        %934 = vst [vmem:[%s404 + $0x18] sm:$0xff] %v930
        %v939 = vunpack.c.l.b16 %v519
        %v940 = vunpack.c.l.b16 %v520
        %v941 = vunpack.c.l.b16 %v521
        %v942 = vunpack.c.l.b16 %v522
        %s943 = scalar_lea.vmem [#allocation10], 256
        %v944 = vld [vmem:[%s943] sm:$0xf]
        %v945 = vld [vmem:[%s943 + $0x4] sm:$0xf]
        %v946 = vld [vmem:[%s943 + $0x8] sm:$0xf]
        %v947 = vld [vmem:[%s943 + $0xc] sm:$0xf]
        %v948 = vld [vmem:[%s943 + $0x10] sm:$0xf]
        %v949 = vld [vmem:[%s943 + $0x14] sm:$0xf]
        %v950 = vld [vmem:[%s943 + $0x18] sm:$0xf]
        %v951 = vld [vmem:[%s943 + $0x1c] sm:$0xf]
        %v952 = vld [vmem:[%s943 + $0x20] sm:$0xf]
        %v953 = vld [vmem:[%s943 + $0x24] sm:$0xf]
        %v954 = vld [vmem:[%s943 + $0x28] sm:$0xf]
        %v955 = vld [vmem:[%s943 + $0x2c] sm:$0xf]
        %v956 = vld [vmem:[%s943 + $0x30] sm:$0xf]
        %v957 = vld [vmem:[%s943 + $0x34] sm:$0xf]
        %v958 = vld [vmem:[%s943 + $0x38] sm:$0xf]
        %v959 = vld [vmem:[%s943 + $0x3c] sm:$0xf]
        %v960 = vld [vmem:[%s943 + $0x40] sm:$0xf]
        %v961 = vld [vmem:[%s943 + $0x44] sm:$0xf]
        %v962 = vld [vmem:[%s943 + $0x48] sm:$0xf]
        %v963 = vld [vmem:[%s943 + $0x4c] sm:$0xf]
        %v964 = vld [vmem:[%s943 + $0x50] sm:$0xf]
        %v965 = vld [vmem:[%s943 + $0x54] sm:$0xf]
        %v966 = vld [vmem:[%s943 + $0x58] sm:$0xf]
        %v967 = vld [vmem:[%s943 + $0x5c] sm:$0xf]
        %v968 = vld [vmem:[%s943 + $0x60] sm:$0xf]
        %v969 = vld [vmem:[%s943 + $0x64] sm:$0xf]
        %v970 = vld [vmem:[%s943 + $0x68] sm:$0xf]
        %v971 = vld [vmem:[%s943 + $0x6c] sm:$0xf]
        %v972 = vld [vmem:[%s943 + $0x70] sm:$0xf]
        %v973 = vld [vmem:[%s943 + $0x74] sm:$0xf]
        %v974 = vld [vmem:[%s943 + $0x78] sm:$0xf]
        %v975 = vld [vmem:[%s943 + $0x7c] sm:$0xf]
        %v976 = vpack.c.b16 %v940, %v939
        %v977 = vpack.c.b16 %v942, %v941
        %v1012 = vunpack.c.l.b16 %v944
        %v1013 = vunpack.c.l.b16 %v945
        %v1014 = vunpack.c.l.b16 %v946
        %v1015 = vunpack.c.l.b16 %v947
        %v1016 = vunpack.c.l.b16 %v948
        %v1017 = vunpack.c.l.b16 %v949
        %v1018 = vunpack.c.l.b16 %v950
        %v1019 = vunpack.c.l.b16 %v951
        %v1020 = vunpack.c.l.b16 %v952
        %v1021 = vunpack.c.l.b16 %v953
        %v1022 = vunpack.c.l.b16 %v954
        %v1023 = vunpack.c.l.b16 %v955
        %v1024 = vunpack.c.l.b16 %v956
        %v1025 = vunpack.c.l.b16 %v957
        %v1026 = vunpack.c.l.b16 %v958
        %v1027 = vunpack.c.l.b16 %v959
        %v1028 = vunpack.c.l.b16 %v960
        %v1029 = vunpack.c.l.b16 %v961
        %v1030 = vunpack.c.l.b16 %v962
        %v1031 = vunpack.c.l.b16 %v963
        %v1032 = vunpack.c.l.b16 %v964
        %v1033 = vunpack.c.l.b16 %v965
        %v1034 = vunpack.c.l.b16 %v966
        %v1035 = vunpack.c.l.b16 %v967
        %v1036 = vunpack.c.l.b16 %v968
        %v1037 = vunpack.c.l.b16 %v969
        %v1038 = vunpack.c.l.b16 %v970
        %v1039 = vunpack.c.l.b16 %v971
        %v1040 = vunpack.c.l.b16 %v972
        %v1041 = vunpack.c.l.b16 %v973
        %v1042 = vunpack.c.l.b16 %v974
        %v1043 = vunpack.c.l.b16 %v975
        %v1044 = vpack.c.b16 %v1013, %v1012
        %v1045 = vpack.c.b16 %v1015, %v1014
        %v1046 = vpack.c.b16 %v1017, %v1016
        %v1047 = vpack.c.b16 %v1019, %v1018
        %v1048 = vpack.c.b16 %v1021, %v1020
        %v1049 = vpack.c.b16 %v1023, %v1022
        %v1050 = vpack.c.b16 %v1025, %v1024
        %v1051 = vpack.c.b16 %v1027, %v1026
        %v1052 = vpack.c.b16 %v1029, %v1028
        %v1053 = vpack.c.b16 %v1031, %v1030
        %v1054 = vpack.c.b16 %v1033, %v1032
        %v1055 = vpack.c.b16 %v1035, %v1034
        %v1056 = vpack.c.b16 %v1037, %v1036
        %v1057 = vpack.c.b16 %v1039, %v1038
        %v1058 = vpack.c.b16 %v1041, %v1040
        %v1059 = vpack.c.b16 %v1043, %v1042
        %1076 = vmatprep.subr.bf16.mxu0 0
        %1077 = vmatpush1.bf16.msra.mxu0 %v1044
        %1078 = vmatprep.subr.bf16.mxu0 0
        %1079 = vmatpush1.bf16.msra.mxu0 %v1045
        %1080 = vmatprep.subr.bf16.mxu0 0
        %1081 = vmatpush1.bf16.msra.mxu0 %v1046
        %1082 = vmatprep.subr.bf16.mxu0 0
        %1083 = vmatpush1.bf16.msra.mxu0 %v1047
        %1084 = vmatprep.subr.bf16.mxu0 0
        %1085 = vmatpush1.bf16.msra.mxu0 %v1048
        %1086 = vmatprep.subr.bf16.mxu0 0
        %1087 = vmatpush1.bf16.msra.mxu0 %v1049
        %1088 = vmatprep.subr.bf16.mxu0 0
        %1089 = vmatpush1.bf16.msra.mxu0 %v1050
        %1090 = vmatprep.subr.bf16.mxu0 0
        %1091 = vmatpush1.bf16.msra.mxu0 %v1051
        %1092 = vmatprep.subr.bf16.mxu0 0
        %1093 = vmatpush1.bf16.msra.mxu0 %v1052
        %1094 = vmatprep.subr.bf16.mxu0 0
        %1095 = vmatpush1.bf16.msra.mxu0 %v1053
        %1096 = vmatprep.subr.bf16.mxu0 0
        %1097 = vmatpush1.bf16.msra.mxu0 %v1054
        %1098 = vmatprep.subr.bf16.mxu0 0
        %1099 = vmatpush1.bf16.msra.mxu0 %v1055
        %1100 = vmatprep.subr.bf16.mxu0 0
        %1101 = vmatpush1.bf16.msra.mxu0 %v1056
        %1102 = vmatprep.subr.bf16.mxu0 0
        %1103 = vmatpush1.bf16.msra.mxu0 %v1057
        %1104 = vmatprep.subr.bf16.mxu0 0
        %1105 = vmatpush1.bf16.msra.mxu0 %v1058
        %1106 = vmatprep.subr.bf16.mxu0 0
        %1107 = vmatpush1.bf16.msra.mxu0 %v1059
        %1108 = vmatprep.mubr.bf16.mxu0 %v976
        %1109 = vmatmul.mubr.bf16.gmra.mrb[0].mxu0 %v575
        %v1110 = vpop.f32.mrb[0].mxu0
        %v1111 = vadd.f32 0.0, %v1110
        %v1112 = vpop.f32.mrb[0].mxu0
        %v1113 = vpop.f32.mrb[0].mxu0
        %v1114 = vadd.f32 0.0, %v1113
        %v1115 = vpop.f32.mrb[0].mxu0
        %1116 = vmatprep.mubr.bf16.mxu0 %v977
        %1117 = vmatmul.mubr.bf16.gmra.mrb[0].mxu0 %v577
        %v1118 = vpop.f32.mrb[0].mxu0
        %v1119 = vadd.f32 0.0, %v1118
        %v1120 = vpop.f32.mrb[0].mxu0
        %v1121 = vpop.f32.mrb[0].mxu0
        %v1122 = vadd.f32 0.0, %v1121
        %v1123 = vpop.f32.mrb[0].mxu0
        %1124 = vdwg.mxu0
        %v1125 = vadd.f32 %v731, %v1111
        %v1126 = vadd.f32 %v731, %v1114
        %v1127 = vadd.f32 %v731, %v1119
        %v1128 = vadd.f32 %v731, %v1122
        %v1130 = vunpack.c.l.b16 %v523
        %s1131 = scalar_lea.vmem [#allocation10], 384
        %v1132 = vld [vmem:[%s1131] sm:$0xf]
        %v1133 = vld [vmem:[%s1131 + $0x4] sm:$0xf]
        %v1134 = vld [vmem:[%s1131 + $0x8] sm:$0xf]
        %v1135 = vld [vmem:[%s1131 + $0xc] sm:$0xf]
        %v1136 = vld [vmem:[%s1131 + $0x10] sm:$0xf]
        %v1137 = vld [vmem:[%s1131 + $0x14] sm:$0xf]
        %v1138 = vld [vmem:[%s1131 + $0x18] sm:$0xf]
        %v1139 = vld [vmem:[%s1131 + $0x1c] sm:$0xf]
        %v1140 = vld [vmem:[%s1131 + $0x20] sm:$0xf]
        %v1141 = vld [vmem:[%s1131 + $0x24] sm:$0xf]
        %v1142 = vld [vmem:[%s1131 + $0x28] sm:$0xf]
        %v1143 = vld [vmem:[%s1131 + $0x2c] sm:$0xf]
        %v1144 = vld [vmem:[%s1131 + $0x30] sm:$0xf]
        %v1145 = vld [vmem:[%s1131 + $0x34] sm:$0xf]
        %v1146 = vld [vmem:[%s1131 + $0x38] sm:$0xf]
        %v1147 = vld [vmem:[%s1131 + $0x3c] sm:$0xf]
        %v1148 = vld [vmem:[%s1131 + $0x40] sm:$0xf]
        %v1149 = vld [vmem:[%s1131 + $0x44] sm:$0xf]
        %v1150 = vld [vmem:[%s1131 + $0x48] sm:$0xf]
        %v1151 = vld [vmem:[%s1131 + $0x4c] sm:$0xf]
        %v1152 = vld [vmem:[%s1131 + $0x50] sm:$0xf]
        %v1153 = vld [vmem:[%s1131 + $0x54] sm:$0xf]
        %v1154 = vld [vmem:[%s1131 + $0x58] sm:$0xf]
        %v1155 = vld [vmem:[%s1131 + $0x5c] sm:$0xf]
        %v1156 = vld [vmem:[%s1131 + $0x60] sm:$0xf]
        %v1157 = vld [vmem:[%s1131 + $0x64] sm:$0xf]
        %v1158 = vld [vmem:[%s1131 + $0x68] sm:$0xf]
        %v1159 = vld [vmem:[%s1131 + $0x6c] sm:$0xf]
        %v1160 = vld [vmem:[%s1131 + $0x70] sm:$0xf]
        %v1161 = vld [vmem:[%s1131 + $0x74] sm:$0xf]
        %v1162 = vld [vmem:[%s1131 + $0x78] sm:$0xf]
        %v1163 = vld [vmem:[%s1131 + $0x7c] sm:$0xf]
        %v1164 = vpack.c.b16 %v941, %v940
        %v1165 = vpack.c.b16 %v1130, %v942
        %v1200 = vunpack.c.l.b16 %v1132
        %v1201 = vunpack.c.l.b16 %v1133
        %v1202 = vunpack.c.l.b16 %v1134
        %v1203 = vunpack.c.l.b16 %v1135
        %v1204 = vunpack.c.l.b16 %v1136
        %v1205 = vunpack.c.l.b16 %v1137
        %v1206 = vunpack.c.l.b16 %v1138
        %v1207 = vunpack.c.l.b16 %v1139
        %v1208 = vunpack.c.l.b16 %v1140
        %v1209 = vunpack.c.l.b16 %v1141
        %v1210 = vunpack.c.l.b16 %v1142
        %v1211 = vunpack.c.l.b16 %v1143
        %v1212 = vunpack.c.l.b16 %v1144
        %v1213 = vunpack.c.l.b16 %v1145
        %v1214 = vunpack.c.l.b16 %v1146
        %v1215 = vunpack.c.l.b16 %v1147
        %v1216 = vunpack.c.l.b16 %v1148
        %v1217 = vunpack.c.l.b16 %v1149
        %v1218 = vunpack.c.l.b16 %v1150
        %v1219 = vunpack.c.l.b16 %v1151
        %v1220 = vunpack.c.l.b16 %v1152
        %v1221 = vunpack.c.l.b16 %v1153
        %v1222 = vunpack.c.l.b16 %v1154
        %v1223 = vunpack.c.l.b16 %v1155
        %v1224 = vunpack.c.l.b16 %v1156
        %v1225 = vunpack.c.l.b16 %v1157
        %v1226 = vunpack.c.l.b16 %v1158
        %v1227 = vunpack.c.l.b16 %v1159
        %v1228 = vunpack.c.l.b16 %v1160
        %v1229 = vunpack.c.l.b16 %v1161
        %v1230 = vunpack.c.l.b16 %v1162
        %v1231 = vunpack.c.l.b16 %v1163
        %v1232 = vpack.c.b16 %v1201, %v1200
        %v1233 = vpack.c.b16 %v1203, %v1202
        %v1234 = vpack.c.b16 %v1205, %v1204
        %v1235 = vpack.c.b16 %v1207, %v1206
        %v1236 = vpack.c.b16 %v1209, %v1208
        %v1237 = vpack.c.b16 %v1211, %v1210
        %v1238 = vpack.c.b16 %v1213, %v1212
        %v1239 = vpack.c.b16 %v1215, %v1214
        %v1240 = vpack.c.b16 %v1217, %v1216
        %v1241 = vpack.c.b16 %v1219, %v1218
        %v1242 = vpack.c.b16 %v1221, %v1220
        %v1243 = vpack.c.b16 %v1223, %v1222
        %v1244 = vpack.c.b16 %v1225, %v1224
        %v1245 = vpack.c.b16 %v1227, %v1226
        %v1246 = vpack.c.b16 %v1229, %v1228
        %v1247 = vpack.c.b16 %v1231, %v1230
        %1264 = vmatprep.subr.bf16.mxu0 0
        %1265 = vmatpush1.bf16.msra.mxu0 %v1232
        %1266 = vmatprep.subr.bf16.mxu0 0
        %1267 = vmatpush1.bf16.msra.mxu0 %v1233
        %1268 = vmatprep.subr.bf16.mxu0 0
        %1269 = vmatpush1.bf16.msra.mxu0 %v1234
        %1270 = vmatprep.subr.bf16.mxu0 0
        %1271 = vmatpush1.bf16.msra.mxu0 %v1235
        %1272 = vmatprep.subr.bf16.mxu0 0
        %1273 = vmatpush1.bf16.msra.mxu0 %v1236
        %1274 = vmatprep.subr.bf16.mxu0 0
        %1275 = vmatpush1.bf16.msra.mxu0 %v1237
        %1276 = vmatprep.subr.bf16.mxu0 0
        %1277 = vmatpush1.bf16.msra.mxu0 %v1238
        %1278 = vmatprep.subr.bf16.mxu0 0
        %1279 = vmatpush1.bf16.msra.mxu0 %v1239
        %1280 = vmatprep.subr.bf16.mxu0 0
        %1281 = vmatpush1.bf16.msra.mxu0 %v1240
        %1282 = vmatprep.subr.bf16.mxu0 0
        %1283 = vmatpush1.bf16.msra.mxu0 %v1241
        %1284 = vmatprep.subr.bf16.mxu0 0
        %1285 = vmatpush1.bf16.msra.mxu0 %v1242
        %1286 = vmatprep.subr.bf16.mxu0 0
        %1287 = vmatpush1.bf16.msra.mxu0 %v1243
        %1288 = vmatprep.subr.bf16.mxu0 0
        %1289 = vmatpush1.bf16.msra.mxu0 %v1244
        %1290 = vmatprep.subr.bf16.mxu0 0
        %1291 = vmatpush1.bf16.msra.mxu0 %v1245
        %1292 = vmatprep.subr.bf16.mxu0 0
        %1293 = vmatpush1.bf16.msra.mxu0 %v1246
        %1294 = vmatprep.subr.bf16.mxu0 0
        %1295 = vmatpush1.bf16.msra.mxu0 %v1247
        %1296 = vmatprep.mubr.bf16.mxu0 %v1164
        %1297 = vmatmul.mubr.bf16.gmra.mrb[0].mxu0 %v775
        %v1298 = vpop.f32.mrb[0].mxu0
        %v1299 = vadd.f32 0.0, %v1298
        %v1300 = vpop.f32.mrb[0].mxu0
        %v1301 = vpop.f32.mrb[0].mxu0
        %v1302 = vadd.f32 0.0, %v1301
        %v1303 = vpop.f32.mrb[0].mxu0
        %1304 = vmatprep.mubr.bf16.mxu0 %v1165
        %1305 = vmatmul.mubr.bf16.gmra.mrb[0].mxu0 %v777
        %v1306 = vpop.f32.mrb[0].mxu0
        %v1307 = vadd.f32 0.0, %v1306
        %v1308 = vpop.f32.mrb[0].mxu0
        %v1309 = vpop.f32.mrb[0].mxu0
        %v1310 = vadd.f32 0.0, %v1309
        %v1311 = vpop.f32.mrb[0].mxu0
        %1312 = vdwg.mxu0
        %v1313 = vadd.f32 %v1125, %v1299
        %v1314 = vadd.f32 %v1126, %v1302
        %v1315 = vadd.f32 %v1127, %v1307
        %v1316 = vadd.f32 %v1128, %v1310
        %s1317 = scalar_lea.vmem %s404, 32 [#allocation13]
        %1318 = vst [vmem:[%s1317] sm:$0xff] %v1313
        %1319 = vst [vmem:[%s1317 + $0x8] sm:$0xff] %v1314
        %1320 = vst [vmem:[%s1317 + $0x10] sm:$0xff] %v1315
        %1321 = vst [vmem:[%s1317 + $0x18] sm:$0xff] %v1316
        %s1322 = scalar_lea.vmem [#allocation10], 512
        %v1323 = vld [vmem:[%s1322] sm:$0xf]
        %v1324 = vld [vmem:[%s1322 + $0x4] sm:$0xf]
        %v1325 = vld [vmem:[%s1322 + $0x8] sm:$0xf]
        %v1326 = vld [vmem:[%s1322 + $0xc] sm:$0xf]
        %v1327 = vld [vmem:[%s1322 + $0x10] sm:$0xf]
        %v1328 = vld [vmem:[%s1322 + $0x14] sm:$0xf]
        %v1329 = vld [vmem:[%s1322 + $0x18] sm:$0xf]
        %v1330 = vld [vmem:[%s1322 + $0x1c] sm:$0xf]
        %v1331 = vld [vmem:[%s1322 + $0x20] sm:$0xf]
        %v1332 = vld [vmem:[%s1322 + $0x24] sm:$0xf]
        %v1333 = vld [vmem:[%s1322 + $0x28] sm:$0xf]
        %v1334 = vld [vmem:[%s1322 + $0x2c] sm:$0xf]
        %v1335 = vld [vmem:[%s1322 + $0x30] sm:$0xf]
        %v1336 = vld [vmem:[%s1322 + $0x34] sm:$0xf]
        %v1337 = vld [vmem:[%s1322 + $0x38] sm:$0xf]
        %v1338 = vld [vmem:[%s1322 + $0x3c] sm:$0xf]
        %v1339 = vld [vmem:[%s1322 + $0x40] sm:$0xf]
        %v1340 = vld [vmem:[%s1322 + $0x44] sm:$0xf]
        %v1341 = vld [vmem:[%s1322 + $0x48] sm:$0xf]
        %v1342 = vld [vmem:[%s1322 + $0x4c] sm:$0xf]
        %v1343 = vld [vmem:[%s1322 + $0x50] sm:$0xf]
        %v1344 = vld [vmem:[%s1322 + $0x54] sm:$0xf]
        %v1345 = vld [vmem:[%s1322 + $0x58] sm:$0xf]
        %v1346 = vld [vmem:[%s1322 + $0x5c] sm:$0xf]
        %v1347 = vld [vmem:[%s1322 + $0x60] sm:$0xf]
        %v1348 = vld [vmem:[%s1322 + $0x64] sm:$0xf]
        %v1349 = vld [vmem:[%s1322 + $0x68] sm:$0xf]
        %v1350 = vld [vmem:[%s1322 + $0x6c] sm:$0xf]
        %v1351 = vld [vmem:[%s1322 + $0x70] sm:$0xf]
        %v1352 = vld [vmem:[%s1322 + $0x74] sm:$0xf]
        %v1353 = vld [vmem:[%s1322 + $0x78] sm:$0xf]
        %v1354 = vld [vmem:[%s1322 + $0x7c] sm:$0xf]
        %v1387 = vunpack.c.l.b16 %v1323
        %v1388 = vunpack.c.l.b16 %v1324
        %v1389 = vunpack.c.l.b16 %v1325
        %v1390 = vunpack.c.l.b16 %v1326
        %v1391 = vunpack.c.l.b16 %v1327
        %v1392 = vunpack.c.l.b16 %v1328
        %v1393 = vunpack.c.l.b16 %v1329
        %v1394 = vunpack.c.l.b16 %v1330
        %v1395 = vunpack.c.l.b16 %v1331
        %v1396 = vunpack.c.l.b16 %v1332
        %v1397 = vunpack.c.l.b16 %v1333
        %v1398 = vunpack.c.l.b16 %v1334
        %v1399 = vunpack.c.l.b16 %v1335
        %v1400 = vunpack.c.l.b16 %v1336
        %v1401 = vunpack.c.l.b16 %v1337
        %v1402 = vunpack.c.l.b16 %v1338
        %v1403 = vunpack.c.l.b16 %v1339
        %v1404 = vunpack.c.l.b16 %v1340
        %v1405 = vunpack.c.l.b16 %v1341
        %v1406 = vunpack.c.l.b16 %v1342
        %v1407 = vunpack.c.l.b16 %v1343
        %v1408 = vunpack.c.l.b16 %v1344
        %v1409 = vunpack.c.l.b16 %v1345
        %v1410 = vunpack.c.l.b16 %v1346
        %v1411 = vunpack.c.l.b16 %v1347
        %v1412 = vunpack.c.l.b16 %v1348
        %v1413 = vunpack.c.l.b16 %v1349
        %v1414 = vunpack.c.l.b16 %v1350
        %v1415 = vunpack.c.l.b16 %v1351
        %v1416 = vunpack.c.l.b16 %v1352
        %v1417 = vunpack.c.l.b16 %v1353
        %v1418 = vunpack.c.l.b16 %v1354
        %v1419 = vpack.c.b16 %v1388, %v1387
        %v1420 = vpack.c.b16 %v1390, %v1389
        %v1421 = vpack.c.b16 %v1392, %v1391
        %v1422 = vpack.c.b16 %v1394, %v1393
        %v1423 = vpack.c.b16 %v1396, %v1395
        %v1424 = vpack.c.b16 %v1398, %v1397
        %v1425 = vpack.c.b16 %v1400, %v1399
        %v1426 = vpack.c.b16 %v1402, %v1401
        %v1427 = vpack.c.b16 %v1404, %v1403
        %v1428 = vpack.c.b16 %v1406, %v1405
        %v1429 = vpack.c.b16 %v1408, %v1407
        %v1430 = vpack.c.b16 %v1410, %v1409
        %v1431 = vpack.c.b16 %v1412, %v1411
        %v1432 = vpack.c.b16 %v1414, %v1413
        %v1433 = vpack.c.b16 %v1416, %v1415
        %v1434 = vpack.c.b16 %v1418, %v1417
        %1451 = vmatprep.subr.bf16.mxu0 0
        %1452 = vmatpush1.bf16.msra.mxu0 %v1419
        %1453 = vmatprep.subr.bf16.mxu0 0
        %1454 = vmatpush1.bf16.msra.mxu0 %v1420
        %1455 = vmatprep.subr.bf16.mxu0 0
        %1456 = vmatpush1.bf16.msra.mxu0 %v1421
        %1457 = vmatprep.subr.bf16.mxu0 0
        %1458 = vmatpush1.bf16.msra.mxu0 %v1422
        %1459 = vmatprep.subr.bf16.mxu0 0
        %1460 = vmatpush1.bf16.msra.mxu0 %v1423
        %1461 = vmatprep.subr.bf16.mxu0 0
        %1462 = vmatpush1.bf16.msra.mxu0 %v1424
        %1463 = vmatprep.subr.bf16.mxu0 0
        %1464 = vmatpush1.bf16.msra.mxu0 %v1425
        %1465 = vmatprep.subr.bf16.mxu0 0
        %1466 = vmatpush1.bf16.msra.mxu0 %v1426
        %1467 = vmatprep.subr.bf16.mxu0 0
        %1468 = vmatpush1.bf16.msra.mxu0 %v1427
        %1469 = vmatprep.subr.bf16.mxu0 0
        %1470 = vmatpush1.bf16.msra.mxu0 %v1428
        %1471 = vmatprep.subr.bf16.mxu0 0
        %1472 = vmatpush1.bf16.msra.mxu0 %v1429
        %1473 = vmatprep.subr.bf16.mxu0 0
        %1474 = vmatpush1.bf16.msra.mxu0 %v1430
        %1475 = vmatprep.subr.bf16.mxu0 0
        %1476 = vmatpush1.bf16.msra.mxu0 %v1431
        %1477 = vmatprep.subr.bf16.mxu0 0
        %1478 = vmatpush1.bf16.msra.mxu0 %v1432
        %1479 = vmatprep.subr.bf16.mxu0 0
        %1480 = vmatpush1.bf16.msra.mxu0 %v1433
        %1481 = vmatprep.subr.bf16.mxu0 0
        %1482 = vmatpush1.bf16.msra.mxu0 %v1434
        %1483 = vmatprep.mubr.bf16.mxu0 %v775
        %1484 = vmatmul.mubr.bf16.gmra.mrb[0].mxu0 %v774
        %v1485 = vpop.f32.mrb[0].mxu0
        %v1486 = vadd.f32 0.0, %v1485
        %v1487 = vpop.f32.mrb[0].mxu0
        %v1488 = vpop.f32.mrb[0].mxu0
        %v1489 = vadd.f32 0.0, %v1488
        %v1490 = vpop.f32.mrb[0].mxu0
        %1491 = vmatprep.mubr.bf16.mxu0 %v777
        %1492 = vmatmul.mubr.bf16.gmra.mrb[0].mxu0 %v776
        %v1493 = vpop.f32.mrb[0].mxu0
        %v1494 = vadd.f32 0.0, %v1493
        %v1495 = vpop.f32.mrb[0].mxu0
        %v1496 = vpop.f32.mrb[0].mxu0
        %v1497 = vadd.f32 0.0, %v1496
        %v1498 = vpop.f32.mrb[0].mxu0
        %1499 = vdwg.mxu0
        %v1500 = vadd.f32 %v731, %v1486
        %v1501 = vadd.f32 %v731, %v1489
        %v1502 = vadd.f32 %v731, %v1494
        %v1503 = vadd.f32 %v731, %v1497
        %v1506 = vunpack.c.l.b16 %v497
        %v1507 = vunpack.c.l.b16 %v432
        %s1508 = scalar_lea.vmem [#allocation10], 640
        %v1509 = vld [vmem:[%s1508] sm:$0xf]
        %v1510 = vld [vmem:[%s1508 + $0x4] sm:$0xf]
        %v1511 = vld [vmem:[%s1508 + $0x8] sm:$0xf]
        %v1512 = vld [vmem:[%s1508 + $0xc] sm:$0xf]
        %v1513 = vld [vmem:[%s1508 + $0x10] sm:$0xf]
        %v1514 = vld [vmem:[%s1508 + $0x14] sm:$0xf]
        %v1515 = vld [vmem:[%s1508 + $0x18] sm:$0xf]
        %v1516 = vld [vmem:[%s1508 + $0x1c] sm:$0xf]
        %v1517 = vld [vmem:[%s1508 + $0x20] sm:$0xf]
        %v1518 = vld [vmem:[%s1508 + $0x24] sm:$0xf]
        %v1519 = vld [vmem:[%s1508 + $0x28] sm:$0xf]
        %v1520 = vld [vmem:[%s1508 + $0x2c] sm:$0xf]
        %v1521 = vld [vmem:[%s1508 + $0x30] sm:$0xf]
        %v1522 = vld [vmem:[%s1508 + $0x34] sm:$0xf]
        %v1523 = vld [vmem:[%s1508 + $0x38] sm:$0xf]
        %v1524 = vld [vmem:[%s1508 + $0x3c] sm:$0xf]
        %v1525 = vld [vmem:[%s1508 + $0x40] sm:$0xf]
        %v1526 = vld [vmem:[%s1508 + $0x44] sm:$0xf]
        %v1527 = vld [vmem:[%s1508 + $0x48] sm:$0xf]
        %v1528 = vld [vmem:[%s1508 + $0x4c] sm:$0xf]
        %v1529 = vld [vmem:[%s1508 + $0x50] sm:$0xf]
        %v1530 = vld [vmem:[%s1508 + $0x54] sm:$0xf]
        %v1531 = vld [vmem:[%s1508 + $0x58] sm:$0xf]
        %v1532 = vld [vmem:[%s1508 + $0x5c] sm:$0xf]
        %v1533 = vld [vmem:[%s1508 + $0x60] sm:$0xf]
        %v1534 = vld [vmem:[%s1508 + $0x64] sm:$0xf]
        %v1535 = vld [vmem:[%s1508 + $0x68] sm:$0xf]
        %v1536 = vld [vmem:[%s1508 + $0x6c] sm:$0xf]
        %v1537 = vld [vmem:[%s1508 + $0x70] sm:$0xf]
        %v1538 = vld [vmem:[%s1508 + $0x74] sm:$0xf]
        %v1539 = vld [vmem:[%s1508 + $0x78] sm:$0xf]
        %v1540 = vld [vmem:[%s1508 + $0x7c] sm:$0xf]
        %v1541 = vpack.c.b16 %v1506, %v739
        %v1542 = vpack.c.b16 %v1507, %v740
        %v1577 = vunpack.c.l.b16 %v1509
        %v1578 = vunpack.c.l.b16 %v1510
        %v1579 = vunpack.c.l.b16 %v1511
        %v1580 = vunpack.c.l.b16 %v1512
        %v1581 = vunpack.c.l.b16 %v1513
        %v1582 = vunpack.c.l.b16 %v1514
        %v1583 = vunpack.c.l.b16 %v1515
        %v1584 = vunpack.c.l.b16 %v1516
        %v1585 = vunpack.c.l.b16 %v1517
        %v1586 = vunpack.c.l.b16 %v1518
        %v1587 = vunpack.c.l.b16 %v1519
        %v1588 = vunpack.c.l.b16 %v1520
        %v1589 = vunpack.c.l.b16 %v1521
        %v1590 = vunpack.c.l.b16 %v1522
        %v1591 = vunpack.c.l.b16 %v1523
        %v1592 = vunpack.c.l.b16 %v1524
        %v1593 = vunpack.c.l.b16 %v1525
        %v1594 = vunpack.c.l.b16 %v1526
        %v1595 = vunpack.c.l.b16 %v1527
        %v1596 = vunpack.c.l.b16 %v1528
        %v1597 = vunpack.c.l.b16 %v1529
        %v1598 = vunpack.c.l.b16 %v1530
        %v1599 = vunpack.c.l.b16 %v1531
        %v1600 = vunpack.c.l.b16 %v1532
        %v1601 = vunpack.c.l.b16 %v1533
        %v1602 = vunpack.c.l.b16 %v1534
        %v1603 = vunpack.c.l.b16 %v1535
        %v1604 = vunpack.c.l.b16 %v1536
        %v1605 = vunpack.c.l.b16 %v1537
        %v1606 = vunpack.c.l.b16 %v1538
        %v1607 = vunpack.c.l.b16 %v1539
        %v1608 = vunpack.c.l.b16 %v1540
        %v1609 = vpack.c.b16 %v1578, %v1577
        %v1610 = vpack.c.b16 %v1580, %v1579
        %v1611 = vpack.c.b16 %v1582, %v1581
        %v1612 = vpack.c.b16 %v1584, %v1583
        %v1613 = vpack.c.b16 %v1586, %v1585
        %v1614 = vpack.c.b16 %v1588, %v1587
        %v1615 = vpack.c.b16 %v1590, %v1589
        %v1616 = vpack.c.b16 %v1592, %v1591
        %v1617 = vpack.c.b16 %v1594, %v1593
        %v1618 = vpack.c.b16 %v1596, %v1595
        %v1619 = vpack.c.b16 %v1598, %v1597
        %v1620 = vpack.c.b16 %v1600, %v1599
        %v1621 = vpack.c.b16 %v1602, %v1601
        %v1622 = vpack.c.b16 %v1604, %v1603
        %v1623 = vpack.c.b16 %v1606, %v1605
        %v1624 = vpack.c.b16 %v1608, %v1607
        %1641 = vmatprep.subr.bf16.mxu0 0
        %1642 = vmatpush1.bf16.msra.mxu0 %v1609
        %1643 = vmatprep.subr.bf16.mxu0 0
        %1644 = vmatpush1.bf16.msra.mxu0 %v1610
        %1645 = vmatprep.subr.bf16.mxu0 0
        %1646 = vmatpush1.bf16.msra.mxu0 %v1611
        %1647 = vmatprep.subr.bf16.mxu0 0
        %1648 = vmatpush1.bf16.msra.mxu0 %v1612
        %1649 = vmatprep.subr.bf16.mxu0 0
        %1650 = vmatpush1.bf16.msra.mxu0 %v1613
        %1651 = vmatprep.subr.bf16.mxu0 0
        %1652 = vmatpush1.bf16.msra.mxu0 %v1614
        %1653 = vmatprep.subr.bf16.mxu0 0
        %1654 = vmatpush1.bf16.msra.mxu0 %v1615
        %1655 = vmatprep.subr.bf16.mxu0 0
        %1656 = vmatpush1.bf16.msra.mxu0 %v1616
        %1657 = vmatprep.subr.bf16.mxu0 0
        %1658 = vmatpush1.bf16.msra.mxu0 %v1617
        %1659 = vmatprep.subr.bf16.mxu0 0
        %1660 = vmatpush1.bf16.msra.mxu0 %v1618
        %1661 = vmatprep.subr.bf16.mxu0 0
        %1662 = vmatpush1.bf16.msra.mxu0 %v1619
        %1663 = vmatprep.subr.bf16.mxu0 0
        %1664 = vmatpush1.bf16.msra.mxu0 %v1620
        %1665 = vmatprep.subr.bf16.mxu0 0
        %1666 = vmatpush1.bf16.msra.mxu0 %v1621
        %1667 = vmatprep.subr.bf16.mxu0 0
        %1668 = vmatpush1.bf16.msra.mxu0 %v1622
        %1669 = vmatprep.subr.bf16.mxu0 0
        %1670 = vmatpush1.bf16.msra.mxu0 %v1623
        %1671 = vmatprep.subr.bf16.mxu0 0
        %1672 = vmatpush1.bf16.msra.mxu0 %v1624
        %1673 = vmatprep.mubr.bf16.mxu0 %v577
        %1674 = vmatmul.mubr.bf16.gmra.mrb[0].mxu0 %v576
        %v1675 = vpop.f32.mrb[0].mxu0
        %v1676 = vadd.f32 0.0, %v1675
        %v1677 = vpop.f32.mrb[0].mxu0
        %v1678 = vpop.f32.mrb[0].mxu0
        %v1679 = vadd.f32 0.0, %v1678
        %v1680 = vpop.f32.mrb[0].mxu0
        %1681 = vmatprep.mubr.bf16.mxu0 %v1542
        %1682 = vmatmul.mubr.bf16.gmra.mrb[0].mxu0 %v1541
        %v1683 = vpop.f32.mrb[0].mxu0
        %v1684 = vadd.f32 0.0, %v1683
        %v1685 = vpop.f32.mrb[0].mxu0
        %v1686 = vpop.f32.mrb[0].mxu0
        %v1687 = vadd.f32 0.0, %v1686
        %v1688 = vpop.f32.mrb[0].mxu0
        %1689 = vdwg.mxu0
        %v1690 = vadd.f32 %v1500, %v1676
        %v1691 = vadd.f32 %v1501, %v1679
        %v1692 = vadd.f32 %v1502, %v1684
        %v1693 = vadd.f32 %v1503, %v1687
        %s1694 = scalar_lea.vmem %s404, 64 [#allocation13]
        %1695 = vst [vmem:[%s1694] sm:$0xff] %v1690
        %1696 = vst [vmem:[%s1694 + $0x8] sm:$0xff] %v1691
        %1697 = vst [vmem:[%s1694 + $0x10] sm:$0xff] %v1692
        %1698 = vst [vmem:[%s1694 + $0x18] sm:$0xff] %v1693
        %s1699 = scalar_lea.vmem [#allocation10], 768
        %v1700 = vld [vmem:[%s1699] sm:$0xf]
        %v1701 = vld [vmem:[%s1699 + $0x4] sm:$0xf]
        %v1702 = vld [vmem:[%s1699 + $0x8] sm:$0xf]
        %v1703 = vld [vmem:[%s1699 + $0xc] sm:$0xf]
        %v1704 = vld [vmem:[%s1699 + $0x10] sm:$0xf]
        %v1705 = vld [vmem:[%s1699 + $0x14] sm:$0xf]
        %v1706 = vld [vmem:[%s1699 + $0x18] sm:$0xf]
        %v1707 = vld [vmem:[%s1699 + $0x1c] sm:$0xf]
        %v1708 = vld [vmem:[%s1699 + $0x20] sm:$0xf]
        %v1709 = vld [vmem:[%s1699 + $0x24] sm:$0xf]
        %v1710 = vld [vmem:[%s1699 + $0x28] sm:$0xf]
        %v1711 = vld [vmem:[%s1699 + $0x2c] sm:$0xf]
        %v1712 = vld [vmem:[%s1699 + $0x30] sm:$0xf]
        %v1713 = vld [vmem:[%s1699 + $0x34] sm:$0xf]
        %v1714 = vld [vmem:[%s1699 + $0x38] sm:$0xf]
        %v1715 = vld [vmem:[%s1699 + $0x3c] sm:$0xf]
        %v1716 = vld [vmem:[%s1699 + $0x40] sm:$0xf]
        %v1717 = vld [vmem:[%s1699 + $0x44] sm:$0xf]
        %v1718 = vld [vmem:[%s1699 + $0x48] sm:$0xf]
        %v1719 = vld [vmem:[%s1699 + $0x4c] sm:$0xf]
        %v1720 = vld [vmem:[%s1699 + $0x50] sm:$0xf]
        %v1721 = vld [vmem:[%s1699 + $0x54] sm:$0xf]
        %v1722 = vld [vmem:[%s1699 + $0x58] sm:$0xf]
        %v1723 = vld [vmem:[%s1699 + $0x5c] sm:$0xf]
        %v1724 = vld [vmem:[%s1699 + $0x60] sm:$0xf]
        %v1725 = vld [vmem:[%s1699 + $0x64] sm:$0xf]
        %v1726 = vld [vmem:[%s1699 + $0x68] sm:$0xf]
        %v1727 = vld [vmem:[%s1699 + $0x6c] sm:$0xf]
        %v1728 = vld [vmem:[%s1699 + $0x70] sm:$0xf]
        %v1729 = vld [vmem:[%s1699 + $0x74] sm:$0xf]
        %v1730 = vld [vmem:[%s1699 + $0x78] sm:$0xf]
        %v1731 = vld [vmem:[%s1699 + $0x7c] sm:$0xf]
        %v1764 = vunpack.c.l.b16 %v1700
        %v1765 = vunpack.c.l.b16 %v1701
        %v1766 = vunpack.c.l.b16 %v1702
        %v1767 = vunpack.c.l.b16 %v1703
        %v1768 = vunpack.c.l.b16 %v1704
        %v1769 = vunpack.c.l.b16 %v1705
        %v1770 = vunpack.c.l.b16 %v1706
        %v1771 = vunpack.c.l.b16 %v1707
        %v1772 = vunpack.c.l.b16 %v1708
        %v1773 = vunpack.c.l.b16 %v1709
        %v1774 = vunpack.c.l.b16 %v1710
        %v1775 = vunpack.c.l.b16 %v1711
        %v1776 = vunpack.c.l.b16 %v1712
        %v1777 = vunpack.c.l.b16 %v1713
        %v1778 = vunpack.c.l.b16 %v1714
        %v1779 = vunpack.c.l.b16 %v1715
        %v1780 = vunpack.c.l.b16 %v1716
        %v1781 = vunpack.c.l.b16 %v1717
        %v1782 = vunpack.c.l.b16 %v1718
        %v1783 = vunpack.c.l.b16 %v1719
        %v1784 = vunpack.c.l.b16 %v1720
        %v1785 = vunpack.c.l.b16 %v1721
        %v1786 = vunpack.c.l.b16 %v1722
        %v1787 = vunpack.c.l.b16 %v1723
        %v1788 = vunpack.c.l.b16 %v1724
        %v1789 = vunpack.c.l.b16 %v1725
        %v1790 = vunpack.c.l.b16 %v1726
        %v1791 = vunpack.c.l.b16 %v1727
        %v1792 = vunpack.c.l.b16 %v1728
        %v1793 = vunpack.c.l.b16 %v1729
        %v1794 = vunpack.c.l.b16 %v1730
        %v1795 = vunpack.c.l.b16 %v1731
        %v1796 = vpack.c.b16 %v1765, %v1764
        %v1797 = vpack.c.b16 %v1767, %v1766
        %v1798 = vpack.c.b16 %v1769, %v1768
        %v1799 = vpack.c.b16 %v1771, %v1770
        %v1800 = vpack.c.b16 %v1773, %v1772
        %v1801 = vpack.c.b16 %v1775, %v1774
        %v1802 = vpack.c.b16 %v1777, %v1776
        %v1803 = vpack.c.b16 %v1779, %v1778
        %v1804 = vpack.c.b16 %v1781, %v1780
        %v1805 = vpack.c.b16 %v1783, %v1782
        %v1806 = vpack.c.b16 %v1785, %v1784
        %v1807 = vpack.c.b16 %v1787, %v1786
        %v1808 = vpack.c.b16 %v1789, %v1788
        %v1809 = vpack.c.b16 %v1791, %v1790
        %v1810 = vpack.c.b16 %v1793, %v1792
        %v1811 = vpack.c.b16 %v1795, %v1794
        %1828 = vmatprep.subr.bf16.mxu0 0
        %1829 = vmatpush1.bf16.msra.mxu0 %v1796
        %1830 = vmatprep.subr.bf16.mxu0 0
        %1831 = vmatpush1.bf16.msra.mxu0 %v1797
        %1832 = vmatprep.subr.bf16.mxu0 0
        %1833 = vmatpush1.bf16.msra.mxu0 %v1798
        %1834 = vmatprep.subr.bf16.mxu0 0
        %1835 = vmatpush1.bf16.msra.mxu0 %v1799
        %1836 = vmatprep.subr.bf16.mxu0 0
        %1837 = vmatpush1.bf16.msra.mxu0 %v1800
        %1838 = vmatprep.subr.bf16.mxu0 0
        %1839 = vmatpush1.bf16.msra.mxu0 %v1801
        %1840 = vmatprep.subr.bf16.mxu0 0
        %1841 = vmatpush1.bf16.msra.mxu0 %v1802
        %1842 = vmatprep.subr.bf16.mxu0 0
        %1843 = vmatpush1.bf16.msra.mxu0 %v1803
        %1844 = vmatprep.subr.bf16.mxu0 0
        %1845 = vmatpush1.bf16.msra.mxu0 %v1804
        %1846 = vmatprep.subr.bf16.mxu0 0
        %1847 = vmatpush1.bf16.msra.mxu0 %v1805
        %1848 = vmatprep.subr.bf16.mxu0 0
        %1849 = vmatpush1.bf16.msra.mxu0 %v1806
        %1850 = vmatprep.subr.bf16.mxu0 0
        %1851 = vmatpush1.bf16.msra.mxu0 %v1807
        %1852 = vmatprep.subr.bf16.mxu0 0
        %1853 = vmatpush1.bf16.msra.mxu0 %v1808
        %1854 = vmatprep.subr.bf16.mxu0 0
        %1855 = vmatpush1.bf16.msra.mxu0 %v1809
        %1856 = vmatprep.subr.bf16.mxu0 0
        %1857 = vmatpush1.bf16.msra.mxu0 %v1810
        %1858 = vmatprep.subr.bf16.mxu0 0
        %1859 = vmatpush1.bf16.msra.mxu0 %v1811
        %1860 = vmatprep.mubr.bf16.mxu0 %v1164
        %1861 = vmatmul.mubr.bf16.gmra.mrb[0].mxu0 %v775
        %v1862 = vpop.f32.mrb[0].mxu0
        %v1863 = vadd.f32 0.0, %v1862
        %v1864 = vpop.f32.mrb[0].mxu0
        %v1865 = vpop.f32.mrb[0].mxu0
        %v1866 = vadd.f32 0.0, %v1865
        %v1867 = vpop.f32.mrb[0].mxu0
        %1868 = vmatprep.mubr.bf16.mxu0 %v1165
        %1869 = vmatmul.mubr.bf16.gmra.mrb[0].mxu0 %v777
        %v1870 = vpop.f32.mrb[0].mxu0
        %v1871 = vadd.f32 0.0, %v1870
        %v1872 = vpop.f32.mrb[0].mxu0
        %v1873 = vpop.f32.mrb[0].mxu0
        %v1874 = vadd.f32 0.0, %v1873
        %v1875 = vpop.f32.mrb[0].mxu0
        %1876 = vdwg.mxu0
        %v1877 = vadd.f32 %v731, %v1863
        %v1878 = vadd.f32 %v731, %v1866
        %v1879 = vadd.f32 %v731, %v1871
        %v1880 = vadd.f32 %v731, %v1874
        %v1882 = vunpack.c.l.b16 %v524
        %s1883 = scalar_lea.vmem [#allocation10], 896
        %v1884 = vld [vmem:[%s1883] sm:$0xf]
        %v1885 = vld [vmem:[%s1883 + $0x4] sm:$0xf]
        %v1886 = vld [vmem:[%s1883 + $0x8] sm:$0xf]
        %v1887 = vld [vmem:[%s1883 + $0xc] sm:$0xf]
        %v1888 = vld [vmem:[%s1883 + $0x10] sm:$0xf]
        %v1889 = vld [vmem:[%s1883 + $0x14] sm:$0xf]
        %v1890 = vld [vmem:[%s1883 + $0x18] sm:$0xf]
        %v1891 = vld [vmem:[%s1883 + $0x1c] sm:$0xf]
        %v1892 = vld [vmem:[%s1883 + $0x20] sm:$0xf]
        %v1893 = vld [vmem:[%s1883 + $0x24] sm:$0xf]
        %v1894 = vld [vmem:[%s1883 + $0x28] sm:$0xf]
        %v1895 = vld [vmem:[%s1883 + $0x2c] sm:$0xf]
        %v1896 = vld [vmem:[%s1883 + $0x30] sm:$0xf]
        %v1897 = vld [vmem:[%s1883 + $0x34] sm:$0xf]
        %v1898 = vld [vmem:[%s1883 + $0x38] sm:$0xf]
        %v1899 = vld [vmem:[%s1883 + $0x3c] sm:$0xf]
        %v1900 = vld [vmem:[%s1883 + $0x40] sm:$0xf]
        %v1901 = vld [vmem:[%s1883 + $0x44] sm:$0xf]
        %v1902 = vld [vmem:[%s1883 + $0x48] sm:$0xf]
        %v1903 = vld [vmem:[%s1883 + $0x4c] sm:$0xf]
        %v1904 = vld [vmem:[%s1883 + $0x50] sm:$0xf]
        %v1905 = vld [vmem:[%s1883 + $0x54] sm:$0xf]
        %v1906 = vld [vmem:[%s1883 + $0x58] sm:$0xf]
        %v1907 = vld [vmem:[%s1883 + $0x5c] sm:$0xf]
        %v1908 = vld [vmem:[%s1883 + $0x60] sm:$0xf]
        %v1909 = vld [vmem:[%s1883 + $0x64] sm:$0xf]
        %v1910 = vld [vmem:[%s1883 + $0x68] sm:$0xf]
        %v1911 = vld [vmem:[%s1883 + $0x6c] sm:$0xf]
        %v1912 = vld [vmem:[%s1883 + $0x70] sm:$0xf]
        %v1913 = vld [vmem:[%s1883 + $0x74] sm:$0xf]
        %v1914 = vld [vmem:[%s1883 + $0x78] sm:$0xf]
        %v1915 = vld [vmem:[%s1883 + $0x7c] sm:$0xf]
        %v1916 = vpack.c.b16 %v1882, %v1130
        %v1950 = vunpack.c.l.b16 %v1884
        %v1951 = vunpack.c.l.b16 %v1885
        %v1952 = vunpack.c.l.b16 %v1886
        %v1953 = vunpack.c.l.b16 %v1887
        %v1954 = vunpack.c.l.b16 %v1888
        %v1955 = vunpack.c.l.b16 %v1889
        %v1956 = vunpack.c.l.b16 %v1890
        %v1957 = vunpack.c.l.b16 %v1891
        %v1958 = vunpack.c.l.b16 %v1892
        %v1959 = vunpack.c.l.b16 %v1893
        %v1960 = vunpack.c.l.b16 %v1894
        %v1961 = vunpack.c.l.b16 %v1895
        %v1962 = vunpack.c.l.b16 %v1896
        %v1963 = vunpack.c.l.b16 %v1897
        %v1964 = vunpack.c.l.b16 %v1898
        %v1965 = vunpack.c.l.b16 %v1899
        %v1966 = vunpack.c.l.b16 %v1900
        %v1967 = vunpack.c.l.b16 %v1901
        %v1968 = vunpack.c.l.b16 %v1902
        %v1969 = vunpack.c.l.b16 %v1903
        %v1970 = vunpack.c.l.b16 %v1904
        %v1971 = vunpack.c.l.b16 %v1905
        %v1972 = vunpack.c.l.b16 %v1906
        %v1973 = vunpack.c.l.b16 %v1907
        %v1974 = vunpack.c.l.b16 %v1908
        %v1975 = vunpack.c.l.b16 %v1909
        %v1976 = vunpack.c.l.b16 %v1910
        %v1977 = vunpack.c.l.b16 %v1911
        %v1978 = vunpack.c.l.b16 %v1912
        %v1979 = vunpack.c.l.b16 %v1913
        %v1980 = vunpack.c.l.b16 %v1914
        %v1981 = vunpack.c.l.b16 %v1915
        %v1982 = vpack.c.b16 %v1951, %v1950
        %v1983 = vpack.c.b16 %v1953, %v1952
        %v1984 = vpack.c.b16 %v1955, %v1954
        %v1985 = vpack.c.b16 %v1957, %v1956
        %v1986 = vpack.c.b16 %v1959, %v1958
        %v1987 = vpack.c.b16 %v1961, %v1960
        %v1988 = vpack.c.b16 %v1963, %v1962
        %v1989 = vpack.c.b16 %v1965, %v1964
        %v1990 = vpack.c.b16 %v1967, %v1966
        %v1991 = vpack.c.b16 %v1969, %v1968
        %v1992 = vpack.c.b16 %v1971, %v1970
        %v1993 = vpack.c.b16 %v1973, %v1972
        %v1994 = vpack.c.b16 %v1975, %v1974
        %v1995 = vpack.c.b16 %v1977, %v1976
        %v1996 = vpack.c.b16 %v1979, %v1978
        %v1997 = vpack.c.b16 %v1981, %v1980
        %2014 = vmatprep.subr.bf16.mxu0 0
        %2015 = vmatpush1.bf16.msra.mxu0 %v1982
        %2016 = vmatprep.subr.bf16.mxu0 0
        %2017 = vmatpush1.bf16.msra.mxu0 %v1983
        %2018 = vmatprep.subr.bf16.mxu0 0
        %2019 = vmatpush1.bf16.msra.mxu0 %v1984
        %2020 = vmatprep.subr.bf16.mxu0 0
        %2021 = vmatpush1.bf16.msra.mxu0 %v1985
        %2022 = vmatprep.subr.bf16.mxu0 0
        %2023 = vmatpush1.bf16.msra.mxu0 %v1986
        %2024 = vmatprep.subr.bf16.mxu0 0
        %2025 = vmatpush1.bf16.msra.mxu0 %v1987
        %2026 = vmatprep.subr.bf16.mxu0 0
        %2027 = vmatpush1.bf16.msra.mxu0 %v1988
        %2028 = vmatprep.subr.bf16.mxu0 0
        %2029 = vmatpush1.bf16.msra.mxu0 %v1989
        %2030 = vmatprep.subr.bf16.mxu0 0
        %2031 = vmatpush1.bf16.msra.mxu0 %v1990
        %2032 = vmatprep.subr.bf16.mxu0 0
        %2033 = vmatpush1.bf16.msra.mxu0 %v1991
        %2034 = vmatprep.subr.bf16.mxu0 0
        %2035 = vmatpush1.bf16.msra.mxu0 %v1992
        %2036 = vmatprep.subr.bf16.mxu0 0
        %2037 = vmatpush1.bf16.msra.mxu0 %v1993
        %2038 = vmatprep.subr.bf16.mxu0 0
        %2039 = vmatpush1.bf16.msra.mxu0 %v1994
        %2040 = vmatprep.subr.bf16.mxu0 0
        %2041 = vmatpush1.bf16.msra.mxu0 %v1995
        %2042 = vmatprep.subr.bf16.mxu0 0
        %2043 = vmatpush1.bf16.msra.mxu0 %v1996
        %2044 = vmatprep.subr.bf16.mxu0 0
        %2045 = vmatpush1.bf16.msra.mxu0 %v1997
        %2046 = vmatprep.mubr.bf16.mxu0 %v977
        %2047 = vmatmul.mubr.bf16.gmra.mrb[0].mxu0 %v577
        %v2048 = vpop.f32.mrb[0].mxu0
        %v2049 = vadd.f32 0.0, %v2048
        %v2050 = vpop.f32.mrb[0].mxu0
        %v2051 = vpop.f32.mrb[0].mxu0
        %v2052 = vadd.f32 0.0, %v2051
        %v2053 = vpop.f32.mrb[0].mxu0
        %2054 = vmatprep.mubr.bf16.mxu0 %v1916
        %2055 = vmatmul.mubr.bf16.gmra.mrb[0].mxu0 %v1542
        %v2056 = vpop.f32.mrb[0].mxu0
        %v2057 = vadd.f32 0.0, %v2056
        %v2058 = vpop.f32.mrb[0].mxu0
        %v2059 = vpop.f32.mrb[0].mxu0
        %v2060 = vadd.f32 0.0, %v2059
        %v2061 = vpop.f32.mrb[0].mxu0
        %2062 = vdwg.mxu0
        %v2063 = vadd.f32 %v1877, %v2049
        %v2064 = vadd.f32 %v1878, %v2052
        %v2065 = vadd.f32 %v1879, %v2057
        %v2066 = vadd.f32 %v1880, %v2060
        %s2067 = scalar_lea.vmem %s404, 96 [#allocation13]
        %2068 = vst [vmem:[%s2067] sm:$0xff] %v2063
        %2069 = vst [vmem:[%s2067 + $0x8] sm:$0xff] %v2064
        %2070 = vst [vmem:[%s2067 + $0x10] sm:$0xff] %v2065
        %2071 = vst [vmem:[%s2067 + $0x18] sm:$0xff] %v2066
        %s2072 = sand.u32 %s201, 1
        %s2073 = scalar_lea.sflag [#allocation6], %s2072
        %s2074 = sand.u32 %s201, 1
        %s2075 = smul.addr %s2074, 128
        %s2076 = scalar_lea.vmem [#allocation13], %s2075
        // Predicated region
        $region61: #{tpu_custom_call.1} parent=39 // pred_check
          %p2077 = pneg %p211
        $region62: #{tpu_custom_call.1} parent=39 // pred_check_branch
          %2079 = sbr.rel (%p2077) target = $region64
        $region63: #{tpu_custom_call.1} parent=39 // pred_region
          #allocation15 [shape = 'u32[6]{0}', space=smem, size = 0x18, scoped, tag = 'DMA stride descriptor']
          %s2080 = smul.u32 4, %s36
          %s2082 = ssub.s32 2048, 2048
          %2083 = vsyncadd %s2073, %s2082
          %s2084 = smul.addr %s35, 32
          %s2085 = sadd.s32 %s2080, %s2084
          %s2086 = smul.addr %s2085, 128
          %s2087 = scalar_lea.hbm %s6, %s2086
          %s2089 = sshll.u32 1, 14
          %s2090 = sxor.u32 4294967295, %s2089
          %s2093 = sshll.u32 7, 18
          %s2094 = sxor.u32 4294967295, %s2093
          %s2095 = sand.u32 0, %s2094
          %s2097 = sor.u32 %s2095, 0
          %s2099 = sshll.u32 3, 24
          %s2100 = sxor.u32 4294967295, %s2099
          %s2101 = sand.u32 %s2097, %s2100
          %s2103 = sor.u32 %s2101, 0
          %s2104 = sshll.u32 %s2076, 4
          %s2105 = int_to_ptr.vmem [resolvable:$true] %s2104
          %2111 = sst [smem:[#allocation15]] 512
          %s2112 = scalar_lea.smem [#allocation15], 1
          %2113 = sst [smem:[%s2112]] 1024
          %s2114 = scalar_lea.smem [#allocation15], 2
          %2115 = sst [smem:[%s2114]] 4
          %s2116 = scalar_lea.smem [#allocation15], 3
          %2117 = sst [smem:[%s2116]] 128
          %s2118 = scalar_lea.smem [#allocation15], 4
          %2119 = sst [smem:[%s2118]] 128
          %s2120 = scalar_lea.smem [#allocation15], 5
          %2121 = sst [smem:[%s2120]] 8
          %2123 = dma.general %s2105, 2048, %s2087, %s2073, [#allocation14], [#allocation15], %s2103, 0
        $region64: #{tpu_custom_call.1} parent=39 // pred_fallthru
          _
      $region40: #{tpu_custom_call.1} parent=5 // pred_fallthru
        _
      %p2124 = scmp.le.s32.totalorder 2, %s26
      // Predicated region
      $region65: #{tpu_custom_call.1} parent=5 // pred_check
        %p2125 = pneg %p2124
      $region66: #{tpu_custom_call.1} parent=5 // pred_check_branch
        %2127 = sbr.rel (%p2125) target = $region68
      $region67: #{tpu_custom_call.1} parent=5 // pred_region
        %s2128 = ssub.s32 %s26, 2
        // Predicated region
        $region69: #{tpu_custom_call.1} parent=67 // pred_check
          %p2129 = pneg %p217
        $region70: #{tpu_custom_call.1} parent=67 // pred_check_branch
          %2131 = sbr.rel (%p2129) target = $region72
        $region71: #{tpu_custom_call.1} parent=67 // pred_region
          %s2132 = sand.u32 %s202, 1
          %s2133 = scalar_lea.sflag [#allocation6], %s2132
          %s2134 = sand.u32 %s202, 1
          %s2135 = smul.addr %s2134, 128
          %s2136 = scalar_lea.vmem [#allocation13], %s2135
          %2137 = dma.done %s2133, 2048
        $region72: #{tpu_custom_call.1} parent=67 // pred_fallthru
          _
      $region68: #{tpu_custom_call.1} parent=5 // pred_fallthru
        _
    $region6: #{tpu_custom_call.1} parent=1 // loop_footer
      %s30 = sadd.s32 1, %s26
    $region7: #{tpu_custom_call.1} parent=1 // loop_footer_branch
      %25 = sbr.rel target = $region3
    $region8: #{tpu_custom_call.1} parent=1 // loop_exit
      _
    %2138 = vsyncpa [#allocation5], 1
    %s2139 = scalar_lea.sflag [#allocation5], 1
    %2140 = vsyncpa %s2139, 1
    %2141 = vsyncpa [#allocation8], 1
    %s2142 = scalar_lea.sflag [#allocation8], 1
    %2143 = vsyncpa %s2142, 1
    %2144 = vsyncpa [#allocation11], 1
    %2145 = vsyncpa [#allocation6], 1
    %s2146 = scalar_lea.sflag [#allocation6], 1
    %2147 = vsyncpa %s2146, 1

</llo_original>
